<compile_context>
chip_gen: v7x
topology: tpu7x:2x2x1
jax: 0.10.0
libtpu: 0.0.40
codegen_flags: <defaults>
</compile_context>

<pallas_src>
import functools

import jax
import jax.numpy as jnp
from jax.experimental import pallas as pl
from jax.experimental.pallas import tpu as pltpu


# ------------------------------- helpers ------------------------------------

_VMEM_TILE_BUDGET = 20 * 1024 * 1024      # soft budget used for tile sizing
_VMEM_LIMIT_BYTES = 40 * 1024 * 1024      # requested scoped VMEM (< v7x 64 MiB)


def _ceil_to(n, m):
    return ((n + m - 1) // m) * m


def _max_tile_rows(d_in, d_pad, l_pad, h_pad, sample, budget_bytes):
    """Largest batch tile whose streamed slabs + intermediates + weights fit."""
    # streamed bf16 slabs, double-buffered: x, enc, (z), dec
    stream = 2 * 2 * (d_in + 2 * l_pad + (l_pad if sample else 0) + 2 * d_pad)
    # f32 intermediates (h, enc, h2, dec) per row
    interm = 4 * (2 * h_pad + 2 * l_pad + 2 * d_pad)
    # weights: assume worst case (double-buffered) bf16 + f32 biases
    weights = 2 * 2 * (d_in * h_pad + h_pad * 2 * l_pad + l_pad * h_pad
                       + h_pad * 2 * d_pad)
    weights += 2 * 4 * (2 * h_pad + 2 * l_pad + 2 * d_pad)
    avail = budget_bytes - weights
    if avail <= 0:
        return 128
    rows = avail // (stream + interm)
    return max(16, min(1024, (rows // 16) * 16))


def _pick_tile_b(B, max_tile):
    """16-aligned batch tile; avoid padding blow-up; >=2 steps for big batches."""
    if B >= 256 and B <= max_tile:
        # give the grid >=2 steps so a two-TensorCore part (v7x) can shard it
        return _ceil_to((B + 1) // 2, 16)
    if B <= max_tile:
        return _ceil_to(B, 16) if B >= 16 else _ceil_to(B, 8)
    best_t, best_pad = 16, _ceil_to(B, 16)
    t = (max_tile // 16) * 16
    while t >= 16:
        pad = _ceil_to(B, t)
        if pad - B <= max(B // 16, 16):
            return t
        if pad < best_pad:
            best_t, best_pad = t, pad
        t -= 16
    return best_t


# ----------------------------- Pallas kernel --------------------------------

def _vae_fused_kernel(*refs, l_pad, d_pad, sample, log_var, onchip_rng):
    f32, bf16 = jnp.float32, jnp.bfloat16

    (x_ref, w1_ref, b1_ref, whe_ref, bhe_ref,
     w2_ref, b2_ref, whd_ref, bhd_ref) = refs[:9]
    rest = refs[9:]
    if sample:
        rng_ref = rest[0]                       # SMEM seed or eps tile
        enc_ref, z_ref, dec_ref = rest[1:]
    else:
        enc_ref, dec_ref = rest
        rng_ref = z_ref = None

    # ------------------------------ encoder ---------------------------------
    x = x_ref[...]                              # bf16 already
    h = jnp.dot(x, w1_ref[...], preferred_element_type=f32)
    h = jnp.maximum(h + b1_ref[...], 0.0)       # f32 epilogue

    # single wide matmul for both heads: [TB, 2*l_pad] = [mu || logvar]
    enc = jnp.dot(h.astype(bf16), whe_ref[...],
                  preferred_element_type=f32) + bhe_ref[...]
    enc_ref[...] = enc.astype(enc_ref.dtype)

    mu = enc[:, :l_pad]

    # --------------------- reparameterization trick -------------------------
    if sample:
        slv = enc[:, l_pad:]
        sigma = jnp.exp(slv * 0.5) if log_var else slv
        if onchip_rng:
            pltpu.prng_seed(rng_ref[0] + pl.program_id(0))
            eps = pltpu.stateful_normal(mu.shape, f32)
        else:
            eps = rng_ref[...].astype(f32)
        z = mu + sigma * eps
        z_ref[...] = z.astype(z_ref.dtype)
    else:
        z = mu                                  # eval path: z == mu, no z output

    # ------------------------------ decoder ---------------------------------
    h2 = jnp.dot(z.astype(bf16), w2_ref[...], preferred_element_type=f32)
    h2 = jnp.maximum(h2 + b2_ref[...], 0.0)

    # single wide matmul for both heads: [TB, 2*d_pad] = [mean || std_pre]
    dec = jnp.dot(h2.astype(bf16), whd_ref[...],
                  preferred_element_type=f32) + bhd_ref[...]
    # softplus only on the std half; both halves are 128-aligned -> unmasked vst
    dec_ref[:, :d_pad] = dec[:, :d_pad].astype(dec_ref.dtype)
    dec_ref[:, d_pad:] = jnp.logaddexp(dec[:, d_pad:], 0.0).astype(dec_ref.dtype)


# ---------------------------- parameter setup -------------------------------

def init_params(key, d_in, hidden, latent):
    """Raw (PyTorch-like) parameters: weights [in, out] f32, biases [1, out] f32."""
    ks = jax.random.split(key, 6)

    def lin(k, fan_in, fan_out):
        kw, kb = jax.random.split(k)
        w = jax.random.normal(kw, (fan_in, fan_out), jnp.float32) / jnp.sqrt(fan_in)
        b = jax.random.normal(kb, (1, fan_out), jnp.float32) * 0.1
        return w, b

    w1, b1 = lin(ks[0], d_in, hidden)
    wmu, bmu = lin(ks[1], hidden, latent)
    wlv, blv = lin(ks[2], hidden, latent)
    w2, b2 = lin(ks[3], latent, hidden)
    wm, bm = lin(ks[4], hidden, d_in)
    ws, bs = lin(ks[5], hidden, d_in)
    return dict(w1=w1, b1=b1, wmu=wmu, bmu=bmu, wlv=wlv, blv=blv,
                w2=w2, b2=b2, wm=wm, bm=bm, ws=ws, bs=bs)


def prepare_params(p, d_in, hidden, latent):
    """Pad lane dims to 128 multiples, fuse paired head weights into single
    slabs, bf16 matmul operands, f32 biases. The x-contraction dim (d_in rows
    of W1) is left unpadded so x can stream at its native feature width."""
    bf16, f32 = jnp.bfloat16, jnp.float32
    d_pad = _ceil_to(d_in, 128)
    h_pad = _ceil_to(hidden, 128)
    l_pad = _ceil_to(latent, 128)

    w1 = jnp.zeros((d_in, h_pad), bf16).at[:, :hidden].set(p["w1"].astype(bf16))
    b1 = jnp.zeros((1, h_pad), f32).at[:, :hidden].set(p["b1"])

    whe = jnp.zeros((h_pad, 2 * l_pad), bf16)
    whe = whe.at[:hidden, :latent].set(p["wmu"].astype(bf16))
    whe = whe.at[:hidden, l_pad:l_pad + latent].set(p["wlv"].astype(bf16))
    bhe = jnp.zeros((1, 2 * l_pad), f32)
    bhe = bhe.at[:, :latent].set(p["bmu"])
    bhe = bhe.at[:, l_pad:l_pad + latent].set(p["blv"])

    w2 = jnp.zeros((l_pad, h_pad), bf16).at[:latent, :hidden].set(p["w2"].astype(bf16))
    b2 = jnp.zeros((1, h_pad), f32).at[:, :hidden].set(p["b2"])

    whd = jnp.zeros((h_pad, 2 * d_pad), bf16)
    whd = whd.at[:hidden, :d_in].set(p["wm"].astype(bf16))
    whd = whd.at[:hidden, d_pad:d_pad + d_in].set(p["ws"].astype(bf16))
    bhd = jnp.zeros((1, 2 * d_pad), f32)
    bhd = bhd.at[:, :d_in].set(p["bm"])
    bhd = bhd.at[:, d_pad:d_pad + d_in].set(p["bs"])

    padded = dict(w1=w1, b1=b1, whe=whe, bhe=bhe, w2=w2, b2=b2, whd=whd, bhd=bhd)
    meta = dict(d_in=d_in, hidden=hidden, latent=latent,
                d_pad=d_pad, h_pad=h_pad, l_pad=l_pad)
    return padded, meta


# ------------------------------ call builder ---------------------------------

def _build_pallas_call(meta, tile_b, n_steps, sample, onchip_rng,
                       single_buffer_weights, log_var):
    d_in, d_pad, l_pad, h_pad = meta["d_in"], meta["d_pad"], meta["l_pad"], meta["h_pad"]
    bf16 = jnp.bfloat16
    b_pad = n_steps * tile_b

    def row_spec(cols):
        return pl.BlockSpec((tile_b, cols), lambda i: (i, 0))

    def resident(shape):
        if single_buffer_weights:
            # constant index_map -> never refetched; single-buffer to save VMEM
            return pl.BlockSpec(shape, lambda i: (0, 0), pipeline_mode=pl.Buffered(1))
        return pl.BlockSpec(shape, lambda i: (0, 0))

    in_specs = [
        row_spec(d_in),                                          # x (bf16)
        resident((d_in, h_pad)), resident((1, h_pad)),           # w1, b1
        resident((h_pad, 2 * l_pad)), resident((1, 2 * l_pad)),  # whe, bhe
        resident((l_pad, h_pad)), resident((1, h_pad)),          # w2, b2
        resident((h_pad, 2 * d_pad)), resident((1, 2 * d_pad)),  # whd, bhd
    ]
    out_specs = [row_spec(2 * l_pad)]
    out_shape = [jax.ShapeDtypeStruct((b_pad, 2 * l_pad), bf16)]  # mu || logvar
    if sample:
        if onchip_rng:
            in_specs.append(pl.BlockSpec(memory_space=pltpu.MemorySpace.SMEM))  # seed
        else:
            in_specs.append(row_spec(l_pad))                      # host eps (bf16)
        out_specs.append(row_spec(l_pad))
        out_shape.append(jax.ShapeDtypeStruct((b_pad, l_pad), bf16))  # z sample
    out_specs.append(row_spec(2 * d_pad))
    out_shape.append(jax.ShapeDtypeStruct((b_pad, 2 * d_pad), bf16))  # mean || std

    kernel = functools.partial(_vae_fused_kernel, l_pad=l_pad, d_pad=d_pad,
                               sample=sample, log_var=log_var,
                               onchip_rng=onchip_rng)
    return pl.pallas_call(
        kernel,
        grid=(n_steps,),
        in_specs=in_specs,
        out_specs=tuple(out_specs),
        out_shape=tuple(out_shape),
        compiler_params=pltpu.CompilerParams(
            dimension_semantics=("parallel",),
            vmem_limit_bytes=_VMEM_LIMIT_BYTES),
    )


# ------------------------------ JAX wrapper ----------------------------------

def vae_forward(x, params, meta, *, training=False, return_latent_sample=False,
                num_samples=1, force_sample=False, logvar_out=True, key=None):
    """Mirrors VAE.forward semantics with a fused encoder/sample/decoder kernel."""
    if num_samples != 1:
        # TODO(synk): num_samples > 1 path (torch.rand-based batched sampling) not implemented.
        raise NotImplementedError("num_samples > 1 not supported in this kernel")

    sample = bool(training or num_samples > 1 or force_sample)
    B, d_in = x.shape
    assert d_in == meta["d_in"]
    d_pad, l_pad, h_pad = meta["d_pad"], meta["l_pad"], meta["h_pad"]
    latent = meta["latent"]

    max_tile = _max_tile_rows(d_in, d_pad, l_pad, h_pad, sample, _VMEM_TILE_BUDGET)
    tile_b = _pick_tile_b(B, max_tile)
    b_pad = _ceil_to(B, tile_b)
    n_steps = b_pad // tile_b

    x_bf = x.astype(jnp.bfloat16)
    if b_pad != B:                                   # pad batch dim only, if at all
        x_bf = jnp.pad(x_bf, ((0, b_pad - B), (0, 0)))

    if key is None:
        key = jax.random.PRNGKey(0)

    weight_args = (params["w1"], params["b1"], params["whe"], params["bhe"],
                   params["w2"], params["b2"], params["whd"], params["bhd"])

    # Preferred config first: on-chip PRNG + single-buffered resident weights.
    # Fallbacks keep the kernel runnable if a pltpu feature is unavailable.
    if sample:
        configs = [(True, True), (True, False), (False, True), (False, False)]
    else:
        configs = [(None, True), (None, False)]

    outs, last_err = None, None
    for onchip_rng, single_buf in configs:
        try:
            extra = ()
            if sample:
                if onchip_rng:
                    extra = (jax.random.randint(key, (1,), 0, 2**31 - 1,
                                                dtype=jnp.int32),)
                else:
                    extra = (jax.random.normal(key, (b_pad, l_pad),
                                               jnp.float32).astype(jnp.bfloat16),)
            call = _build_pallas_call(meta, tile_b, n_steps, sample,
                                      bool(onchip_rng), single_buf, logvar_out)
            outs = jax.block_until_ready(call(x_bf, *weight_args, *extra))
            break
        except Exception as e:            # fall back to the next config
            last_err, outs = e, None
    if outs is None:
        raise last_err

    if sample:
        enc, z, dec = outs
    else:
        enc, dec = outs
        z = None

    z_mu = enc[:B, :latent].astype(jnp.float32)
    z_slv = enc[:B, l_pad:l_pad + latent].astype(jnp.float32)
    x_mean = dec[:B, :d_in].astype(jnp.float32)
    x_std = dec[:B, d_pad:d_pad + d_in].astype(jnp.float32)
    if not return_latent_sample:
        return z_mu, z_slv, x_mean, x_std
    z_sample = z[:B, :latent].astype(jnp.float32) if sample else z_mu
    return z_mu, z_slv, x_mean, x_std, z_sample


# --------------------------- pure-JAX reference ------------------------------

def _q(a):  # bf16 rounding, mirroring kernel matmul operands / bf16 outputs
    return a.astype(jnp.bfloat16).astype(jnp.float32)


def _reference_decode(z, raw):
    h = jnp.maximum(jnp.dot(_q(z), _q(raw["w2"])) + raw["b2"], 0.0)
    mean = jnp.dot(_q(h), _q(raw["wm"])) + raw["bm"]
    std = jnp.logaddexp(jnp.dot(_q(h), _q(raw["ws"])) + raw["bs"], 0.0)
    return _q(mean), _q(std)


def _reference_eval(x, raw):
    h = jnp.maximum(jnp.dot(_q(x), _q(raw["w1"])) + raw["b1"], 0.0)
    mu = jnp.dot(_q(h), _q(raw["wmu"])) + raw["bmu"]
    lv = jnp.dot(_q(h), _q(raw["wlv"])) + raw["blv"]
    mean, std = _reference_decode(mu, raw)
    return _q(mu), _q(lv), mean, std


# ---------------------------------- main -------------------------------------

if __name__ == "__main__":
    B, D_IN, HIDDEN, LATENT = 8, 32, 64, 16

    key = jax.random.PRNGKey(0)
    k_x, k_p, k_eps = jax.random.split(key, 3)
    x = jax.random.normal(k_x, (B, D_IN), jnp.float32)
    raw = init_params(k_p, D_IN, HIDDEN, LATENT)
    params, meta = prepare_params(raw, D_IN, HIDDEN, LATENT)

    # eval-mode forward: z_sample = z_mu (matches torch eval path)
    outs_eval = vae_forward(x, params, meta, training=False,
                            return_latent_sample=True)
    # forced sampling: z = mu + exp(0.5 * logvar) * eps
    outs_sample = vae_forward(x, params, meta, force_sample=True,
                              return_latent_sample=True, key=k_eps)

    for o in outs_eval + outs_sample:
        jax.block_until_ready(o)

    z_mu, z_lv, x_mean, x_std, z_s = outs_eval
    assert z_mu.shape == (B, LATENT) and z_lv.shape == (B, LATENT)
    assert x_mean.shape == (B, D_IN) and x_std.shape == (B, D_IN)
    assert z_s.shape == (B, LATENT)
    assert bool(jnp.all(x_std > 0.0))
    assert bool(jnp.allclose(z_s, z_mu))          # eval path: z_sample == z_mu

    # numeric check against a pure-JAX reference mirroring the kernel math
    ref_mu, ref_lv, ref_mean, ref_std = _reference_eval(x, raw)
    for got, ref in ((z_mu, ref_mu), (z_lv, ref_lv),
                     (x_mean, ref_mean), (x_std, ref_std)):
        assert bool(jnp.allclose(got, ref, rtol=2e-2, atol=2e-2)), "eval mismatch"

    # sample path: decoder outputs must be consistent with the returned z_sample
    s_mu, s_lv, s_mean, s_std, s_z = outs_sample
    assert s_z.shape == (B, LATENT) and bool(jnp.all(s_std > 0.0))
    ref_mean2, ref_std2 = _reference_decode(s_z, raw)
    assert bool(jnp.allclose(s_mean, ref_mean2, rtol=2e-2, atol=2e-2)), "dec mean mismatch"
    assert bool(jnp.allclose(s_std, ref_std2, rtol=2e-2, atol=2e-2)), "dec std mismatch"

    print("KERNEL_OK")
</pallas_src>

<mosaic_0001>
module attributes {stable_mosaic.version = 11 : i64} {
  func.func @_vae_fused_kernel(%arg0: i32, %arg1: memref<8x32xbf16, #tpu.memory_space<vmem>>, %arg2: memref<32x128xbf16, #tpu.memory_space<vmem>>, %arg3: memref<1x128xf32, #tpu.memory_space<vmem>>, %arg4: memref<128x256xbf16, #tpu.memory_space<vmem>>, %arg5: memref<1x256xf32, #tpu.memory_space<vmem>>, %arg6: memref<128x128xbf16, #tpu.memory_space<vmem>>, %arg7: memref<1x128xf32, #tpu.memory_space<vmem>>, %arg8: memref<128x256xbf16, #tpu.memory_space<vmem>>, %arg9: memref<1x256xf32, #tpu.memory_space<vmem>>, %arg10: memref<8x256xbf16, #tpu.memory_space<vmem>>, %arg11: memref<8x256xbf16, #tpu.memory_space<vmem>>) attributes {dimension_semantics = [#tpu.dimension_semantics<parallel>], iteration_bounds = array<i64: 1>, scalar_prefetch = 0 : i64, scratch_operands = 0 : i64, tpu.core_type = #tpu.core_type<tc>, window_params = [{transform_indices = @transform_0, window_bounds = array<i64: 8, 32>}, {pipeline_mode = #tpu.pipeline_mode<synchronous>, transform_indices = @transform_1, window_bounds = array<i64: 32, 128>}, {pipeline_mode = #tpu.pipeline_mode<synchronous>, transform_indices = @transform_2, window_bounds = array<i64: 1, 128>}, {pipeline_mode = #tpu.pipeline_mode<synchronous>, transform_indices = @transform_3, window_bounds = array<i64: 128, 256>}, {pipeline_mode = #tpu.pipeline_mode<synchronous>, transform_indices = @transform_4, window_bounds = array<i64: 1, 256>}, {pipeline_mode = #tpu.pipeline_mode<synchronous>, transform_indices = @transform_5, window_bounds = array<i64: 128, 128>}, {pipeline_mode = #tpu.pipeline_mode<synchronous>, transform_indices = @transform_6, window_bounds = array<i64: 1, 128>}, {pipeline_mode = #tpu.pipeline_mode<synchronous>, transform_indices = @transform_7, window_bounds = array<i64: 128, 256>}, {pipeline_mode = #tpu.pipeline_mode<synchronous>, transform_indices = @transform_8, window_bounds = array<i64: 1, 256>}, {transform_indices = @transform_9, window_bounds = array<i64: 8, 256>}, {transform_indices = @transform_10, window_bounds = array<i64: 8, 256>}]} {
    %c0 = arith.constant 0 : index
    %c0_0 = arith.constant 0 : index
    %0 = vector.load %arg1[%c0, %c0_0] : memref<8x32xbf16, #tpu.memory_space<vmem>>, vector<8x32xbf16>
    %c0_1 = arith.constant 0 : index
    %c0_2 = arith.constant 0 : index
    %1 = vector.load %arg2[%c0_1, %c0_2] : memref<32x128xbf16, #tpu.memory_space<vmem>>, vector<32x128xbf16>
    %cst = arith.constant dense<0.000000e+00> : vector<8x128xf32>
    %2 = tpu.matmul %0, %1, %cst {dimension_numbers = #tpu.dot_dimension_numbers<[1], [0], [0], [1], [0, 0, 1, 1], [], []>} : vector<8x32xbf16>, vector<32x128xbf16>, vector<8x128xf32> -> vector<8x128xf32>
    %c0_3 = arith.constant 0 : index
    %c0_4 = arith.constant 0 : index
    %3 = vector.load %arg3[%c0_3, %c0_4] : memref<1x128xf32, #tpu.memory_space<vmem>>, vector<1x128xf32>
    %4 = vector.broadcast %3 : vector<1x128xf32> to vector<8x128xf32>
    %5 = arith.addf %2, %4 : vector<8x128xf32>
    %cst_5 = arith.constant 0.000000e+00 : f32
    %6 = vector.broadcast %cst_5 : f32 to vector<8x128xf32>
    %7 = arith.maximumf %5, %6 : vector<8x128xf32>
    %8 = arith.truncf %7 : vector<8x128xf32> to vector<8x128xbf16>
    %c0_6 = arith.constant 0 : index
    %c0_7 = arith.constant 0 : index
    %9 = vector.load %arg4[%c0_6, %c0_7] : memref<128x256xbf16, #tpu.memory_space<vmem>>, vector<128x256xbf16>
    %cst_8 = arith.constant dense<0.000000e+00> : vector<8x256xf32>
    %10 = tpu.matmul %8, %9, %cst_8 {dimension_numbers = #tpu.dot_dimension_numbers<[1], [0], [0], [1], [0, 0, 1, 1], [], []>} : vector<8x128xbf16>, vector<128x256xbf16>, vector<8x256xf32> -> vector<8x256xf32>
    %c0_9 = arith.constant 0 : index
    %c0_10 = arith.constant 0 : index
    %11 = vector.load %arg5[%c0_9, %c0_10] : memref<1x256xf32, #tpu.memory_space<vmem>>, vector<1x256xf32>
    %12 = vector.broadcast %11 : vector<1x256xf32> to vector<8x256xf32>
    %13 = arith.addf %10, %12 : vector<8x256xf32>
    %14 = arith.truncf %13 : vector<8x256xf32> to vector<8x256xbf16>
    %c0_11 = arith.constant 0 : index
    %c0_12 = arith.constant 0 : index
    %15 = vector.load %arg10[%c0_11, %c0_12] : memref<8x256xbf16, #tpu.memory_space<vmem>>, vector<8x256xbf16>
    tpu.vector_store %arg10[%c0_11, %c0_12], %14 {strides = array<i32>} : memref<8x256xbf16, #tpu.memory_space<vmem>>, vector<8x256xbf16>,
    %16 = vector.extract_strided_slice %13 {offsets = [0, 0], sizes = [8, 128], strides = [1, 1]} : vector<8x256xf32> to vector<8x128xf32>
    %17 = arith.truncf %16 : vector<8x128xf32> to vector<8x128xbf16>
    %c0_13 = arith.constant 0 : index
    %c0_14 = arith.constant 0 : index
    %18 = vector.load %arg6[%c0_13, %c0_14] : memref<128x128xbf16, #tpu.memory_space<vmem>>, vector<128x128xbf16>
    %cst_15 = arith.constant dense<0.000000e+00> : vector<8x128xf32>
    %19 = tpu.matmul %17, %18, %cst_15 {dimension_numbers = #tpu.dot_dimension_numbers<[1], [0], [0], [1], [0, 0, 1, 1], [], []>} : vector<8x128xbf16>, vector<128x128xbf16>, vector<8x128xf32> -> vector<8x128xf32>
    %c0_16 = arith.constant 0 : index
    %c0_17 = arith.constant 0 : index
    %20 = vector.load %arg7[%c0_16, %c0_17] : memref<1x128xf32, #tpu.memory_space<vmem>>, vector<1x128xf32>
    %21 = vector.broadcast %20 : vector<1x128xf32> to vector<8x128xf32>
    %22 = arith.addf %19, %21 : vector<8x128xf32>
    %cst_18 = arith.constant 0.000000e+00 : f32
    %23 = vector.broadcast %cst_18 : f32 to vector<8x128xf32>
    %24 = arith.maximumf %22, %23 : vector<8x128xf32>
    %25 = arith.truncf %24 : vector<8x128xf32> to vector<8x128xbf16>
    %c0_19 = arith.constant 0 : index
    %c0_20 = arith.constant 0 : index
    %26 = vector.load %arg8[%c0_19, %c0_20] : memref<128x256xbf16, #tpu.memory_space<vmem>>, vector<128x256xbf16>
    %cst_21 = arith.constant dense<0.000000e+00> : vector<8x256xf32>
    %27 = tpu.matmul %25, %26, %cst_21 {dimension_numbers = #tpu.dot_dimension_numbers<[1], [0], [0], [1], [0, 0, 1, 1], [], []>} : vector<8x128xbf16>, vector<128x256xbf16>, vector<8x256xf32> -> vector<8x256xf32>
    %c0_22 = arith.constant 0 : index
    %c0_23 = arith.constant 0 : index
    %28 = vector.load %arg9[%c0_22, %c0_23] : memref<1x256xf32, #tpu.memory_space<vmem>>, vector<1x256xf32>
    %29 = vector.broadcast %28 : vector<1x256xf32> to vector<8x256xf32>
    %30 = arith.addf %27, %29 : vector<8x256xf32>
    %31 = vector.extract_strided_slice %30 {offsets = [0, 0], sizes = [8, 128], strides = [1, 1]} : vector<8x256xf32> to vector<8x128xf32>
    %32 = arith.truncf %31 : vector<8x128xf32> to vector<8x128xbf16>
    %c0_24 = arith.constant 0 : index
    %c0_25 = arith.constant 0 : index
    %33 = vector.load %arg11[%c0_24, %c0_25] : memref<8x256xbf16, #tpu.memory_space<vmem>>, vector<8x128xbf16>
    tpu.vector_store %arg11[%c0_24, %c0_25], %32 {strides = array<i32>} : memref<8x256xbf16, #tpu.memory_space<vmem>>, vector<8x128xbf16>,
    %34 = vector.extract_strided_slice %30 {offsets = [0, 128], sizes = [8, 128], strides = [1, 1]} : vector<8x256xf32> to vector<8x128xf32>
    %cst_26 = arith.constant 0.000000e+00 : f32
    %35 = vector.broadcast %cst_26 : f32 to vector<8x128xf32>
    %36 = arith.maximumf %34, %35 : vector<8x128xf32>
    %37 = vector.broadcast %cst_26 : f32 to vector<8x128xf32>
    %38 = arith.subf %34, %37 : vector<8x128xf32>
    %39 = arith.cmpf one, %38, %38 : vector<8x128xf32>
    %40 = vector.broadcast %cst_26 : f32 to vector<8x128xf32>
    %41 = arith.addf %34, %40 : vector<8x128xf32>
    %42 = math.absf %38 : vector<8x128xf32>
    %cst_27 = arith.constant 0.000000e+00 : f32
    %43 = vector.broadcast %cst_27 : f32 to vector<8x128xf32>
    %44 = arith.subf %43, %42 : vector<8x128xf32>
    %45 = math.exp %44 : vector<8x128xf32>
    %46 = math.log1p %45 : vector<8x128xf32>
    %47 = arith.addf %36, %46 : vector<8x128xf32>
    %48 = arith.select %39, %41, %47 : vector<8x128xi1>, vector<8x128xf32>
    %49 = arith.truncf %48 : vector<8x128xf32> to vector<8x128xbf16>
    %c0_28 = arith.constant 0 : index
    %c128 = arith.constant 128 : index
    %50 = vector.load %arg11[%c0_28, %c128] : memref<8x256xbf16, #tpu.memory_space<vmem>>, vector<8x128xbf16>
    tpu.vector_store %arg11[%c0_28, %c128], %49 {strides = array<i32>} : memref<8x256xbf16, #tpu.memory_space<vmem>>, vector<8x128xbf16>,
    return
  }
  func.func @transform_0(%arg0: i32) -> (i32, i32) {
    %c0_i32 = arith.constant 0 : i32
    %c0_i32_0 = arith.constant 0 : i32
    return %arg0, %c0_i32 : i32, i32
  }
  func.func @transform_1(%arg0: i32) -> (i32, i32) {
    %c0_i32 = arith.constant 0 : i32
    %c0_i32_0 = arith.constant 0 : i32
    %c0_i32_1 = arith.constant 0 : i32
    return %c0_i32, %c0_i32_0 : i32, i32
  }
  func.func @transform_2(%arg0: i32) -> (i32, i32) {
    %c0_i32 = arith.constant 0 : i32
    %c0_i32_0 = arith.constant 0 : i32
    %c0_i32_1 = arith.constant 0 : i32
    return %c0_i32, %c0_i32_0 : i32, i32
  }
  func.func @transform_3(%arg0: i32) -> (i32, i32) {
    %c0_i32 = arith.constant 0 : i32
    %c0_i32_0 = arith.constant 0 : i32
    %c0_i32_1 = arith.constant 0 : i32
    return %c0_i32, %c0_i32_0 : i32, i32
  }
  func.func @transform_4(%arg0: i32) -> (i32, i32) {
    %c0_i32 = arith.constant 0 : i32
    %c0_i32_0 = arith.constant 0 : i32
    %c0_i32_1 = arith.constant 0 : i32
    return %c0_i32, %c0_i32_0 : i32, i32
  }
  func.func @transform_5(%arg0: i32) -> (i32, i32) {
    %c0_i32 = arith.constant 0 : i32
    %c0_i32_0 = arith.constant 0 : i32
    %c0_i32_1 = arith.constant 0 : i32
    return %c0_i32, %c0_i32_0 : i32, i32
  }
  func.func @transform_6(%arg0: i32) -> (i32, i32) {
    %c0_i32 = arith.constant 0 : i32
    %c0_i32_0 = arith.constant 0 : i32
    %c0_i32_1 = arith.constant 0 : i32
    return %c0_i32, %c0_i32_0 : i32, i32
  }
  func.func @transform_7(%arg0: i32) -> (i32, i32) {
    %c0_i32 = arith.constant 0 : i32
    %c0_i32_0 = arith.constant 0 : i32
    %c0_i32_1 = arith.constant 0 : i32
    return %c0_i32, %c0_i32_0 : i32, i32
  }
  func.func @transform_8(%arg0: i32) -> (i32, i32) {
    %c0_i32 = arith.constant 0 : i32
    %c0_i32_0 = arith.constant 0 : i32
    %c0_i32_1 = arith.constant 0 : i32
    return %c0_i32, %c0_i32_0 : i32, i32
  }
  func.func @transform_9(%arg0: i32) -> (i32, i32) {
    %c0_i32 = arith.constant 0 : i32
    %c0_i32_0 = arith.constant 0 : i32
    return %arg0, %c0_i32 : i32, i32
  }
  func.func @transform_10(%arg0: i32) -> (i32, i32) {
    %c0_i32 = arith.constant 0 : i32
    %c0_i32_0 = arith.constant 0 : i32
    return %arg0, %c0_i32 : i32, i32
  }
}

module attributes {stable_mosaic.version = 11 : i64} {
  func.func @_vae_fused_kernel(%arg0: i32, %arg1: memref<8x32xbf16, #tpu.memory_space<vmem>>, %arg2: memref<32x128xbf16, #tpu.memory_space<vmem>>, %arg3: memref<1x128xf32, #tpu.memory_space<vmem>>, %arg4: memref<128x256xbf16, #tpu.memory_space<vmem>>, %arg5: memref<1x256xf32, #tpu.memory_space<vmem>>, %arg6: memref<128x128xbf16, #tpu.memory_space<vmem>>, %arg7: memref<1x128xf32, #tpu.memory_space<vmem>>, %arg8: memref<128x256xbf16, #tpu.memory_space<vmem>>, %arg9: memref<1x256xf32, #tpu.memory_space<vmem>>, %arg10: memref<8x256xbf16, #tpu.memory_space<vmem>>, %arg11: memref<8x256xbf16, #tpu.memory_space<vmem>>) attributes {dimension_semantics = [#tpu.dimension_semantics<parallel>], iteration_bounds = array<i64: 1>, scalar_prefetch = 0 : i64, scratch_operands = 0 : i64, tpu.core_type = #tpu.core_type<tc>, window_params = [{transform_indices = @transform_0, window_bounds = array<i64: 8, 32>}, {pipeline_mode = #tpu.pipeline_mode<synchronous>, transform_indices = @transform_1, window_bounds = array<i64: 32, 128>}, {pipeline_mode = #tpu.pipeline_mode<synchronous>, transform_indices = @transform_2, window_bounds = array<i64: 1, 128>}, {pipeline_mode = #tpu.pipeline_mode<synchronous>, transform_indices = @transform_3, window_bounds = array<i64: 128, 256>}, {pipeline_mode = #tpu.pipeline_mode<synchronous>, transform_indices = @transform_4, window_bounds = array<i64: 1, 256>}, {pipeline_mode = #tpu.pipeline_mode<synchronous>, transform_indices = @transform_5, window_bounds = array<i64: 128, 128>}, {pipeline_mode = #tpu.pipeline_mode<synchronous>, transform_indices = @transform_6, window_bounds = array<i64: 1, 128>}, {pipeline_mode = #tpu.pipeline_mode<synchronous>, transform_indices = @transform_7, window_bounds = array<i64: 128, 256>}, {pipeline_mode = #tpu.pipeline_mode<synchronous>, transform_indices = @transform_8, window_bounds = array<i64: 1, 256>}, {transform_indices = @transform_9, window_bounds = array<i64: 8, 256>}, {transform_indices = @transform_10, window_bounds = array<i64: 8, 256>}]} {
    %c0 = arith.constant 0 : index
    %c0_0 = arith.constant 0 : index
    %0 = vector.load %arg1[%c0, %c0_0] : memref<8x32xbf16, #tpu.memory_space<vmem>>, vector<8x32xbf16>
    %c0_1 = arith.constant 0 : index
    %c0_2 = arith.constant 0 : index
    %1 = vector.load %arg2[%c0_1, %c0_2] : memref<32x128xbf16, #tpu.memory_space<vmem>>, vector<32x128xbf16>
    %cst = arith.constant dense<0.000000e+00> : vector<8x128xf32>
    %2 = tpu.matmul %0, %1, %cst {dimension_numbers = #tpu.dot_dimension_numbers<[1], [0], [0], [1], [0, 0, 1, 1], [], []>} : vector<8x32xbf16>, vector<32x128xbf16>, vector<8x128xf32> -> vector<8x128xf32>
    %c0_3 = arith.constant 0 : index
    %c0_4 = arith.constant 0 : index
    %3 = vector.load %arg3[%c0_3, %c0_4] : memref<1x128xf32, #tpu.memory_space<vmem>>, vector<1x128xf32>
    %4 = vector.broadcast %3 : vector<1x128xf32> to vector<8x128xf32>
    %5 = arith.addf %2, %4 : vector<8x128xf32>
    %cst_5 = arith.constant 0.000000e+00 : f32
    %6 = vector.broadcast %cst_5 : f32 to vector<8x128xf32>
    %7 = arith.maximumf %5, %6 : vector<8x128xf32>
    %8 = arith.truncf %7 : vector<8x128xf32> to vector<8x128xbf16>
    %c0_6 = arith.constant 0 : index
    %c0_7 = arith.constant 0 : index
    %9 = vector.load %arg4[%c0_6, %c0_7] : memref<128x256xbf16, #tpu.memory_space<vmem>>, vector<128x256xbf16>
    %cst_8 = arith.constant dense<0.000000e+00> : vector<8x256xf32>
    %10 = tpu.matmul %8, %9, %cst_8 {dimension_numbers = #tpu.dot_dimension_numbers<[1], [0], [0], [1], [0, 0, 1, 1], [], []>} : vector<8x128xbf16>, vector<128x256xbf16>, vector<8x256xf32> -> vector<8x256xf32>
    %c0_9 = arith.constant 0 : index
    %c0_10 = arith.constant 0 : index
    %11 = vector.load %arg5[%c0_9, %c0_10] : memref<1x256xf32, #tpu.memory_space<vmem>>, vector<1x256xf32>
    %12 = vector.broadcast %11 : vector<1x256xf32> to vector<8x256xf32>
    %13 = arith.addf %10, %12 : vector<8x256xf32>
    %14 = arith.truncf %13 : vector<8x256xf32> to vector<8x256xbf16>
    %c0_11 = arith.constant 0 : index
    %c0_12 = arith.constant 0 : index
    %15 = vector.load %arg10[%c0_11, %c0_12] : memref<8x256xbf16, #tpu.memory_space<vmem>>, vector<8x256xbf16>
    tpu.vector_store %arg10[%c0_11, %c0_12], %14 {strides = array<i32>} : memref<8x256xbf16, #tpu.memory_space<vmem>>, vector<8x256xbf16>,
    %16 = vector.extract_strided_slice %13 {offsets = [0, 0], sizes = [8, 128], strides = [1, 1]} : vector<8x256xf32> to vector<8x128xf32>
    %17 = arith.truncf %16 : vector<8x128xf32> to vector<8x128xbf16>
    %c0_13 = arith.constant 0 : index
    %c0_14 = arith.constant 0 : index
    %18 = vector.load %arg6[%c0_13, %c0_14] : memref<128x128xbf16, #tpu.memory_space<vmem>>, vector<128x128xbf16>
    %cst_15 = arith.constant dense<0.000000e+00> : vector<8x128xf32>
    %19 = tpu.matmul %17, %18, %cst_15 {dimension_numbers = #tpu.dot_dimension_numbers<[1], [0], [0], [1], [0, 0, 1, 1], [], []>} : vector<8x128xbf16>, vector<128x128xbf16>, vector<8x128xf32> -> vector<8x128xf32>
    %c0_16 = arith.constant 0 : index
    %c0_17 = arith.constant 0 : index
    %20 = vector.load %arg7[%c0_16, %c0_17] : memref<1x128xf32, #tpu.memory_space<vmem>>, vector<1x128xf32>
    %21 = vector.broadcast %20 : vector<1x128xf32> to vector<8x128xf32>
    %22 = arith.addf %19, %21 : vector<8x128xf32>
    %cst_18 = arith.constant 0.000000e+00 : f32
    %23 = vector.broadcast %cst_18 : f32 to vector<8x128xf32>
    %24 = arith.maximumf %22, %23 : vector<8x128xf32>
    %25 = arith.truncf %24 : vector<8x128xf32> to vector<8x128xbf16>
    %c0_19 = arith.constant 0 : index
    %c0_20 = arith.constant 0 : index
    %26 = vector.load %arg8[%c0_19, %c0_20] : memref<128x256xbf16, #tpu.memory_space<vmem>>, vector<128x256xbf16>
    %cst_21 = arith.constant dense<0.000000e+00> : vector<8x256xf32>
    %27 = tpu.matmul %25, %26, %cst_21 {dimension_numbers = #tpu.dot_dimension_numbers<[1], [0], [0], [1], [0, 0, 1, 1], [], []>} : vector<8x128xbf16>, vector<128x256xbf16>, vector<8x256xf32> -> vector<8x256xf32>
    %c0_22 = arith.constant 0 : index
    %c0_23 = arith.constant 0 : index
    %28 = vector.load %arg9[%c0_22, %c0_23] : memref<1x256xf32, #tpu.memory_space<vmem>>, vector<1x256xf32>
    %29 = vector.broadcast %28 : vector<1x256xf32> to vector<8x256xf32>
    %30 = arith.addf %27, %29 : vector<8x256xf32>
    %31 = vector.extract_strided_slice %30 {offsets = [0, 0], sizes = [8, 128], strides = [1, 1]} : vector<8x256xf32> to vector<8x128xf32>
    %32 = arith.truncf %31 : vector<8x128xf32> to vector<8x128xbf16>
    %c0_24 = arith.constant 0 : index
    %c0_25 = arith.constant 0 : index
    %33 = vector.load %arg11[%c0_24, %c0_25] : memref<8x256xbf16, #tpu.memory_space<vmem>>, vector<8x128xbf16>
    tpu.vector_store %arg11[%c0_24, %c0_25], %32 {strides = array<i32>} : memref<8x256xbf16, #tpu.memory_space<vmem>>, vector<8x128xbf16>,
    %34 = vector.extract_strided_slice %30 {offsets = [0, 128], sizes = [8, 128], strides = [1, 1]} : vector<8x256xf32> to vector<8x128xf32>
    %cst_26 = arith.constant 0.000000e+00 : f32
    %35 = vector.broadcast %cst_26 : f32 to vector<8x128xf32>
    %36 = arith.maximumf %34, %35 : vector<8x128xf32>
    %37 = vector.broadcast %cst_26 : f32 to vector<8x128xf32>
    %38 = arith.subf %34, %37 : vector<8x128xf32>
    %39 = arith.cmpf one, %38, %38 : vector<8x128xf32>
    %40 = vector.broadcast %cst_26 : f32 to vector<8x128xf32>
    %41 = arith.addf %34, %40 : vector<8x128xf32>
    %42 = math.absf %38 : vector<8x128xf32>
    %cst_27 = arith.constant 0.000000e+00 : f32
    %43 = vector.broadcast %cst_27 : f32 to vector<8x128xf32>
    %44 = arith.subf %43, %42 : vector<8x128xf32>
    %45 = math.exp %44 : vector<8x128xf32>
    %46 = math.log1p %45 : vector<8x128xf32>
    %47 = arith.addf %36, %46 : vector<8x128xf32>
    %48 = arith.select %39, %41, %47 : vector<8x128xi1>, vector<8x128xf32>
    %49 = arith.truncf %48 : vector<8x128xf32> to vector<8x128xbf16>
    %c0_28 = arith.constant 0 : index
    %c128 = arith.constant 128 : index
    %50 = vector.load %arg11[%c0_28, %c128] : memref<8x256xbf16, #tpu.memory_space<vmem>>, vector<8x128xbf16>
    tpu.vector_store %arg11[%c0_28, %c128], %49 {strides = array<i32>} : memref<8x256xbf16, #tpu.memory_space<vmem>>, vector<8x128xbf16>,
    return
  }
  func.func @transform_0(%arg0: i32) -> (i32, i32) {
    %c0_i32 = arith.constant 0 : i32
    %c0_i32_0 = arith.constant 0 : i32
    return %arg0, %c0_i32 : i32, i32
  }
  func.func @transform_1(%arg0: i32) -> (i32, i32) {
    %c0_i32 = arith.constant 0 : i32
    %c0_i32_0 = arith.constant 0 : i32
    %c0_i32_1 = arith.constant 0 : i32
    return %c0_i32, %c0_i32_0 : i32, i32
  }
  func.func @transform_2(%arg0: i32) -> (i32, i32) {
    %c0_i32 = arith.constant 0 : i32
    %c0_i32_0 = arith.constant 0 : i32
    %c0_i32_1 = arith.constant 0 : i32
    return %c0_i32, %c0_i32_0 : i32, i32
  }
  func.func @transform_3(%arg0: i32) -> (i32, i32) {
    %c0_i32 = arith.constant 0 : i32
    %c0_i32_0 = arith.constant 0 : i32
    %c0_i32_1 = arith.constant 0 : i32
    return %c0_i32, %c0_i32_0 : i32, i32
  }
  func.func @transform_4(%arg0: i32) -> (i32, i32) {
    %c0_i32 = arith.constant 0 : i32
    %c0_i32_0 = arith.constant 0 : i32
    %c0_i32_1 = arith.constant 0 : i32
    return %c0_i32, %c0_i32_0 : i32, i32
  }
  func.func @transform_5(%arg0: i32) -> (i32, i32) {
    %c0_i32 = arith.constant 0 : i32
    %c0_i32_0 = arith.constant 0 : i32
    %c0_i32_1 = arith.constant 0 : i32
    return %c0_i32, %c0_i32_0 : i32, i32
  }
  func.func @transform_6(%arg0: i32) -> (i32, i32) {
    %c0_i32 = arith.constant 0 : i32
    %c0_i32_0 = arith.constant 0 : i32
    %c0_i32_1 = arith.constant 0 : i32
    return %c0_i32, %c0_i32_0 : i32, i32
  }
  func.func @transform_7(%arg0: i32) -> (i32, i32) {
    %c0_i32 = arith.constant 0 : i32
    %c0_i32_0 = arith.constant 0 : i32
    %c0_i32_1 = arith.constant 0 : i32
    return %c0_i32, %c0_i32_0 : i32, i32
  }
  func.func @transform_8(%arg0: i32) -> (i32, i32) {
    %c0_i32 = arith.constant 0 : i32
    %c0_i32_0 = arith.constant 0 : i32
    %c0_i32_1 = arith.constant 0 : i32
    return %c0_i32, %c0_i32_0 : i32, i32
  }
  func.func @transform_9(%arg0: i32) -> (i32, i32) {
    %c0_i32 = arith.constant 0 : i32
    %c0_i32_0 = arith.constant 0 : i32
    return %arg0, %c0_i32 : i32, i32
  }
  func.func @transform_10(%arg0: i32) -> (i32, i32) {
    %c0_i32 = arith.constant 0 : i32
    %c0_i32_0 = arith.constant 0 : i32
    return %arg0, %c0_i32 : i32, i32
  }
}

</mosaic_0001>

<llo_original>
// kernel: tpu_custom_call.1
$region0: #{tpu_custom_call.1}
  #allocation0 [shape = 'u32[]', space=smem, size = 0x4, offset = 0x4, fixed_abs, tag = 'smem constant byte address 0x4 - core index']
  #allocation1 [shape = 'u32[144,128]{1,0:T(1,128)}', space=vmem, size = 0x12000, scoped, tag = 'internal scratch']
  %s0 = inlined_call_operand.hbm [shape: bf16[8,32], index: 0, kind: input, shape index: {}]
  %s1 = inlined_call_operand.hbm [shape: bf16[32,128], index: 1, kind: input, shape index: {}]
  %s2 = inlined_call_operand.vmem [shape: f32[1,128], index: 2, kind: input, shape index: {}]
  %s3 = inlined_call_operand.hbm [shape: bf16[128,256], index: 3, kind: input, shape index: {}]
  %s4 = inlined_call_operand.vmem [shape: f32[1,256], index: 4, kind: input, shape index: {}]
  %s5 = inlined_call_operand.hbm [shape: bf16[128,128], index: 5, kind: input, shape index: {}]
  %s6 = inlined_call_operand.vmem [shape: f32[1,128], index: 6, kind: input, shape index: {}]
  %s7 = inlined_call_operand.hbm [shape: bf16[128,256], index: 7, kind: input, shape index: {}]
  %s8 = inlined_call_operand.vmem [shape: f32[1,256], index: 8, kind: input, shape index: {}]
  %s9 = inlined_call_operand.hbm [shape: bf16[8,256], index: 9, kind: output, shape index: {0}]
  %s10 = inlined_call_operand.hbm [shape: bf16[8,256], index: 10, kind: output, shape index: {1}]
  %11 = xla_tuple %s9, %s10
  %s12 = sld [smem:[#allocation0]]
  $region74: #{tpu_custom_call.1} parent=0
    _
  %s14 = ssub.s32 1, %s12
  %s15 = scalar_select 0, %s14, %s12
  $region1: #{tpu_custom_call.1} parent=0
    #allocation2 [shape = 'u8[2048]{0}', space=vmem, size = 0x800, scoped, tag = 'input window, operand 0, single buffered']
    #allocation3 [shape = 's32[1]{0}', space=sflag, size = 0x4, scoped, tag = 'scoped memory for tpu_custom_call.1']
    #allocation4 [shape = 's32[1]{0}', space=sflag, size = 0x4, scoped, tag = 'scoped memory for tpu_custom_call.1']
    #allocation5 [shape = 'u8[8192]{0}', space=vmem, size = 0x2000, scoped, tag = 'input window, operand 1, single buffered']
    #allocation6 [shape = 's32[1]{0}', space=sflag, size = 0x4, scoped, tag = 'scoped memory for tpu_custom_call.1']
    #allocation7 [shape = 'u8[65536]{0}', space=vmem, size = 0x10000, scoped, tag = 'input window, operand 3, single buffered']
    #allocation8 [shape = 'u8[32768]{0}', space=vmem, size = 0x8000, scoped, tag = 'input window, operand 5, single buffered']
    #allocation9 [shape = 's32[1]{0}', space=sflag, size = 0x4, scoped, tag = 'scoped memory for tpu_custom_call.1']
    #allocation10 [shape = 'u8[65536]{0}', space=vmem, size = 0x10000, scoped, tag = 'input window, operand 7, single buffered']
    #allocation11 [shape = 'u8[4096]{0}', space=vmem, size = 0x1000, scoped, tag = 'output window, operand 0, single buffered']
    #allocation12 [shape = 'u8[4096]{0}', space=vmem, size = 0x1000, scoped, tag = 'output window, operand 1, single buffered']
    #allocation13 [shape = 's32[1]{0}', space=sflag, size = 0x4, scoped, tag = 'scoped memory for tpu_custom_call.1']
    %16 = vsyncpa [#allocation3], 0
    %17 = vsyncpa [#allocation6], 0
    %18 = vsyncpa [#allocation9], 0
    %19 = vsyncpa [#allocation4], 0
    %20 = vsyncpa [#allocation13], 0
    // Predicated region
    $region2: #{tpu_custom_call.1} parent=1 // pred_check
      _
    $region3: #{tpu_custom_call.1} parent=1 // pred_check_branch
      %22 = sbr.rel (0) target = $region5
    $region4: #{tpu_custom_call.1} parent=1 // pred_region
      %s24 = ssub.s32 64, 64
      %25 = vsyncadd [#allocation3], %s24
      %s27 = sshll.u32 [#allocation2], 4
      %s28 = int_to_ptr.vmem [resolvable:$true] %s27
      %30 = dma.hbm_to_vmem [thread:$0]  %s0, 64, %s28, [#allocation3]
    $region5: #{tpu_custom_call.1} parent=1 // pred_fallthru
      _
    // Predicated region
    $region6: #{tpu_custom_call.1} parent=1 // pred_check
      _
    $region7: #{tpu_custom_call.1} parent=1 // pred_check_branch
      %32 = sbr.rel (0) target = $region9
    $region8: #{tpu_custom_call.1} parent=1 // pred_region
      %s34 = ssub.s32 256, 256
      %35 = vsyncadd [#allocation6], %s34
      %s36 = sshll.u32 [#allocation5], 4
      %s37 = int_to_ptr.vmem [resolvable:$true] %s36
      %42 = dma.hbm_to_vmem [thread:$0]  %s1, 256, %s37, [#allocation6], 64, 64, 4
    $region9: #{tpu_custom_call.1} parent=1 // pred_fallthru
      _
    // Predicated region
    $region10: #{tpu_custom_call.1} parent=1 // pred_check
      _
    $region11: #{tpu_custom_call.1} parent=1 // pred_check_branch
      %44 = sbr.rel (0) target = $region13
    $region12: #{tpu_custom_call.1} parent=1 // pred_region
      _
    $region13: #{tpu_custom_call.1} parent=1 // pred_fallthru
      _
    // Predicated region
    $region14: #{tpu_custom_call.1} parent=1 // pred_check
      _
    $region15: #{tpu_custom_call.1} parent=1 // pred_check_branch
      %46 = sbr.rel (0) target = $region17
    $region16: #{tpu_custom_call.1} parent=1 // pred_region
      %s48 = ssub.s32 2048, 2048
      %49 = vsyncadd [#allocation6], %s48
      %s50 = sshll.u32 [#allocation7], 4
      %s51 = int_to_ptr.vmem [resolvable:$true] %s50
      %56 = dma.hbm_to_vmem [thread:$0]  %s3, 2048, %s51, [#allocation6], 128, 128, 8
    $region17: #{tpu_custom_call.1} parent=1 // pred_fallthru
      _
    // Predicated region
    $region18: #{tpu_custom_call.1} parent=1 // pred_check
      _
    $region19: #{tpu_custom_call.1} parent=1 // pred_check_branch
      %58 = sbr.rel (0) target = $region21
    $region20: #{tpu_custom_call.1} parent=1 // pred_region
      _
    $region21: #{tpu_custom_call.1} parent=1 // pred_fallthru
      _
    // Predicated region
    $region22: #{tpu_custom_call.1} parent=1 // pred_check
      _
    $region23: #{tpu_custom_call.1} parent=1 // pred_check_branch
      %60 = sbr.rel (0) target = $region25
    $region24: #{tpu_custom_call.1} parent=1 // pred_region
      %s62 = ssub.s32 1024, 1024
      %63 = vsyncadd [#allocation9], %s62
      %s64 = sshll.u32 [#allocation8], 4
      %s65 = int_to_ptr.vmem [resolvable:$true] %s64
      %70 = dma.hbm_to_vmem [thread:$0]  %s5, 1024, %s65, [#allocation9], 64, 64, 4
    $region25: #{tpu_custom_call.1} parent=1 // pred_fallthru
      _
    // Predicated region
    $region26: #{tpu_custom_call.1} parent=1 // pred_check
      _
    $region27: #{tpu_custom_call.1} parent=1 // pred_check_branch
      %72 = sbr.rel (0) target = $region29
    $region28: #{tpu_custom_call.1} parent=1 // pred_region
      _
    $region29: #{tpu_custom_call.1} parent=1 // pred_fallthru
      _
    // Predicated region
    $region30: #{tpu_custom_call.1} parent=1 // pred_check
      _
    $region31: #{tpu_custom_call.1} parent=1 // pred_check_branch
      %74 = sbr.rel (0) target = $region33
    $region32: #{tpu_custom_call.1} parent=1 // pred_region
      %s76 = ssub.s32 2048, 2048
      %77 = vsyncadd [#allocation9], %s76
      %s78 = sshll.u32 [#allocation10], 4
      %s79 = int_to_ptr.vmem [resolvable:$true] %s78
      %84 = dma.hbm_to_vmem [thread:$0]  %s7, 2048, %s79, [#allocation9], 128, 128, 8
    $region33: #{tpu_custom_call.1} parent=1 // pred_fallthru
      _
    // Predicated region
    $region34: #{tpu_custom_call.1} parent=1 // pred_check
      _
    $region35: #{tpu_custom_call.1} parent=1 // pred_check_branch
      %86 = sbr.rel (0) target = $region37
    $region36: #{tpu_custom_call.1} parent=1 // pred_region
      _
    $region37: #{tpu_custom_call.1} parent=1 // pred_fallthru
      _
    // Predicated region
    $region38: #{tpu_custom_call.1} parent=1 // pred_check
      _
    $region39: #{tpu_custom_call.1} parent=1 // pred_check_branch
      %88 = sbr.rel (0) target = $region41
    $region40: #{tpu_custom_call.1} parent=1 // pred_region
      %89 = dma.done [#allocation3], 64
    $region41: #{tpu_custom_call.1} parent=1 // pred_fallthru
      _
    // Predicated region
    $region42: #{tpu_custom_call.1} parent=1 // pred_check
      _
    $region43: #{tpu_custom_call.1} parent=1 // pred_check_branch
      %91 = sbr.rel (0) target = $region45
    $region44: #{tpu_custom_call.1} parent=1 // pred_region
      %92 = dma.done [#allocation6], 256
    $region45: #{tpu_custom_call.1} parent=1 // pred_fallthru
      _
    // Predicated region
    $region46: #{tpu_custom_call.1} parent=1 // pred_check
      _
    $region47: #{tpu_custom_call.1} parent=1 // pred_check_branch
      %94 = sbr.rel (0) target = $region49
    $region48: #{tpu_custom_call.1} parent=1 // pred_region
      %95 = dma.done [#allocation6], 2048
    $region49: #{tpu_custom_call.1} parent=1 // pred_fallthru
      _
    // Predicated region
    $region50: #{tpu_custom_call.1} parent=1 // pred_check
      _
    $region51: #{tpu_custom_call.1} parent=1 // pred_check_branch
      %97 = sbr.rel (0) target = $region53
    $region52: #{tpu_custom_call.1} parent=1 // pred_region
      %98 = dma.done [#allocation9], 1024
    $region53: #{tpu_custom_call.1} parent=1 // pred_fallthru
      _
    // Predicated region
    $region54: #{tpu_custom_call.1} parent=1 // pred_check
      _
    $region55: #{tpu_custom_call.1} parent=1 // pred_check_branch
      %100 = sbr.rel (0) target = $region57
    $region56: #{tpu_custom_call.1} parent=1 // pred_region
      %101 = dma.done [#allocation9], 2048
    $region57: #{tpu_custom_call.1} parent=1 // pred_fallthru
      _
    %v103 = vld [vmem:[#allocation2] sm:$0xf]
    %v104 = vld [vmem:[#allocation5] sm:$0xf]
    %v105 = vld [vmem:[#allocation5 + $0x4] sm:$0xf]
    %v106 = vld [vmem:[#allocation5 + $0x8] sm:$0xf]
    %v107 = vld [vmem:[#allocation5 + $0xc] sm:$0xf]
    %v108 = vld [vmem:[%s2] sm:$0x1]
    %v110 = vlaneseq
    %v111 = vshrl.u32 %v110, 7
    %v112 = vsub.s32 0, %v111
    %v113 = vrot.slane %v108, %v112
    %v119 = vunpack.c.l.b16 %v104
    %v120 = vunpack.c.l.b16 %v105
    %v121 = vunpack.c.l.b16 %v106
    %v122 = vunpack.c.l.b16 %v107
    %v123 = vpack.c.b16 %v120, %v119
    %v124 = vpack.c.b16 %v122, %v121
    %vm127 = vcmask 261120
    %v129 = vsel %vm127, %v103, 0
    %131 = vmatprep.subr.bf16.mxu0 0
    %132 = vmatpush1.bf16.msra.mxu0 %v123
    %133 = vmatprep.subr.bf16.mxu0 0
    %134 = vmatpush1.bf16.msra.mxu0 %v124
    %135 = vmatprep.subr.bf16.mxu0 0
    %136 = vmatpush1.bf16.msra.mxu0 0
    %137 = vmatprep.subr.bf16.mxu0 0
    %138 = vmatpush1.bf16.msra.mxu0 0
    %139 = vmatprep.subr.bf16.mxu0 0
    %140 = vmatpush1.bf16.msra.mxu0 0
    %141 = vmatprep.subr.bf16.mxu0 0
    %142 = vmatpush1.bf16.msra.mxu0 0
    %143 = vmatprep.subr.bf16.mxu0 0
    %144 = vmatpush1.bf16.msra.mxu0 0
    %145 = vmatprep.subr.bf16.mxu0 0
    %146 = vmatpush1.bf16.msra.mxu0 0
    %147 = vmatprep.subr.bf16.mxu0 0
    %148 = vmatpush1.bf16.msra.mxu0 0
    %149 = vmatprep.subr.bf16.mxu0 0
    %150 = vmatpush1.bf16.msra.mxu0 0
    %151 = vmatprep.subr.bf16.mxu0 0
    %152 = vmatpush1.bf16.msra.mxu0 0
    %153 = vmatprep.subr.bf16.mxu0 0
    %154 = vmatpush1.bf16.msra.mxu0 0
    %155 = vmatprep.subr.bf16.mxu0 0
    %156 = vmatpush1.bf16.msra.mxu0 0
    %157 = vmatprep.subr.bf16.mxu0 0
    %158 = vmatpush1.bf16.msra.mxu0 0
    %159 = vmatprep.subr.bf16.mxu0 0
    %160 = vmatpush1.bf16.msra.mxu0 0
    %161 = vmatprep.subr.bf16.mxu0 0
    %162 = vmatpush1.bf16.msra.mxu0 0
    %163 = vmatprep.mubr.bf16.mxu0 0
    %164 = vmatmul.mubr.bf16.gmra.mrb[0].mxu0 %v129
    %v165 = vpop.f32.mrb[0].mxu0
    %v166 = vadd.f32 %v113, %v165
    %v167 = vpop.f32.mrb[0].mxu0
    %v168 = vpop.f32.mrb[0].mxu0
    %v169 = vpop.f32.mrb[0].mxu0
    %170 = vdwg.mxu0
    %v171 = vmax.f32 %v166, 0.0
    %v172 = vpack.c.bf16 %v171, %v171
    %v173 = vld [vmem:[#allocation7] sm:$0xff]
    %v174 = vld [vmem:[#allocation7 + $0x8] sm:$0xff]
    %v175 = vld [vmem:[#allocation7 + $0x10] sm:$0xff]
    %v176 = vld [vmem:[#allocation7 + $0x18] sm:$0xff]
    %v177 = vld [vmem:[#allocation7 + $0x20] sm:$0xff]
    %v178 = vld [vmem:[#allocation7 + $0x28] sm:$0xff]
    %v179 = vld [vmem:[#allocation7 + $0x30] sm:$0xff]
    %v180 = vld [vmem:[#allocation7 + $0x38] sm:$0xff]
    %v181 = vld [vmem:[#allocation7 + $0x40] sm:$0xff]
    %v182 = vld [vmem:[#allocation7 + $0x48] sm:$0xff]
    %v183 = vld [vmem:[#allocation7 + $0x50] sm:$0xff]
    %v184 = vld [vmem:[#allocation7 + $0x58] sm:$0xff]
    %v185 = vld [vmem:[#allocation7 + $0x60] sm:$0xff]
    %v186 = vld [vmem:[#allocation7 + $0x68] sm:$0xff]
    %v187 = vld [vmem:[#allocation7 + $0x70] sm:$0xff]
    %v188 = vld [vmem:[#allocation7 + $0x78] sm:$0xff]
    %v189 = vld [vmem:[%s4] sm:$0x3]
    %v191 = vlaneseq
    %v192 = vshrl.u32 %v191, 7
    %v193 = vsub.s32 0, %v192
    %v194 = vrot.slane %v189, %v193
    %v195 = vlaneseq
    %v196 = vshrl.u32 %v195, 7
    %v197 = vsub.s32 1, %v196
    %v198 = vrot.slane %v189, %v197
    %v217 = vunpack.c.l.b16 %v173
    %v218 = vunpack.c.h.b16 %v173
    %v219 = vunpack.c.l.b16 %v174
    %v220 = vunpack.c.h.b16 %v174
    %v221 = vunpack.c.l.b16 %v175
    %v222 = vunpack.c.h.b16 %v175
    %v223 = vunpack.c.l.b16 %v176
    %v224 = vunpack.c.h.b16 %v176
    %v225 = vunpack.c.l.b16 %v177
    %v226 = vunpack.c.h.b16 %v177
    %v227 = vunpack.c.l.b16 %v178
    %v228 = vunpack.c.h.b16 %v178
    %v229 = vunpack.c.l.b16 %v179
    %v230 = vunpack.c.h.b16 %v179
    %v231 = vunpack.c.l.b16 %v180
    %v232 = vunpack.c.h.b16 %v180
    %v233 = vunpack.c.l.b16 %v181
    %v234 = vunpack.c.h.b16 %v181
    %v235 = vunpack.c.l.b16 %v182
    %v236 = vunpack.c.h.b16 %v182
    %v237 = vunpack.c.l.b16 %v183
    %v238 = vunpack.c.h.b16 %v183
    %v239 = vunpack.c.l.b16 %v184
    %v240 = vunpack.c.h.b16 %v184
    %v241 = vunpack.c.l.b16 %v185
    %v242 = vunpack.c.h.b16 %v185
    %v243 = vunpack.c.l.b16 %v186
    %v244 = vunpack.c.h.b16 %v186
    %v245 = vunpack.c.l.b16 %v187
    %v246 = vunpack.c.h.b16 %v187
    %v247 = vunpack.c.l.b16 %v188
    %v248 = vunpack.c.h.b16 %v188
    %v249 = vpack.c.b16 %v219, %v217
    %v250 = vpack.c.b16 %v220, %v218
    %v251 = vpack.c.b16 %v223, %v221
    %v252 = vpack.c.b16 %v224, %v222
    %v253 = vpack.c.b16 %v227, %v225
    %v254 = vpack.c.b16 %v228, %v226
    %v255 = vpack.c.b16 %v231, %v229
    %v256 = vpack.c.b16 %v232, %v230
    %v257 = vpack.c.b16 %v235, %v233
    %v258 = vpack.c.b16 %v236, %v234
    %v259 = vpack.c.b16 %v239, %v237
    %v260 = vpack.c.b16 %v240, %v238
    %v261 = vpack.c.b16 %v243, %v241
    %v262 = vpack.c.b16 %v244, %v242
    %v263 = vpack.c.b16 %v247, %v245
    %v264 = vpack.c.b16 %v248, %v246
    %281 = vmatprep.subr.bf16.mxu0 %v250
    %282 = vmatpush1.bf16.msra.mxu0 %v249
    %283 = vmatprep.subr.bf16.mxu0 %v252
    %284 = vmatpush1.bf16.msra.mxu0 %v251
    %285 = vmatprep.subr.bf16.mxu0 %v254
    %286 = vmatpush1.bf16.msra.mxu0 %v253
    %287 = vmatprep.subr.bf16.mxu0 %v256
    %288 = vmatpush1.bf16.msra.mxu0 %v255
    %289 = vmatprep.subr.bf16.mxu0 %v258
    %290 = vmatpush1.bf16.msra.mxu0 %v257
    %291 = vmatprep.subr.bf16.mxu0 %v260
    %292 = vmatpush1.bf16.msra.mxu0 %v259
    %293 = vmatprep.subr.bf16.mxu0 %v262
    %294 = vmatpush1.bf16.msra.mxu0 %v261
    %295 = vmatprep.subr.bf16.mxu0 %v264
    %296 = vmatpush1.bf16.msra.mxu0 %v263
    %297 = vmatprep.subr.bf16.mxu0 0
    %298 = vmatpush1.bf16.msra.mxu0 0
    %299 = vmatprep.subr.bf16.mxu0 0
    %300 = vmatpush1.bf16.msra.mxu0 0
    %301 = vmatprep.subr.bf16.mxu0 0
    %302 = vmatpush1.bf16.msra.mxu0 0
    %303 = vmatprep.subr.bf16.mxu0 0
    %304 = vmatpush1.bf16.msra.mxu0 0
    %305 = vmatprep.subr.bf16.mxu0 0
    %306 = vmatpush1.bf16.msra.mxu0 0
    %307 = vmatprep.subr.bf16.mxu0 0
    %308 = vmatpush1.bf16.msra.mxu0 0
    %309 = vmatprep.subr.bf16.mxu0 0
    %310 = vmatpush1.bf16.msra.mxu0 0
    %311 = vmatprep.subr.bf16.mxu0 0
    %312 = vmatpush1.bf16.msra.mxu0 0
    %313 = vmatprep.mubr.bf16.mxu0 0
    %314 = vmatmul.mubr.bf16.gmra.mrb[0].mxu0 %v172
    %v315 = vpop.f32.mrb[0].mxu0
    %v316 = vadd.f32 %v194, %v315
    %v317 = vpop.f32.mrb[0].mxu0
    %v318 = vadd.f32 %v198, %v317
    %v319 = vpop.f32.mrb[0].mxu0
    %v320 = vpop.f32.mrb[0].mxu0
    %321 = vdwg.mxu0
    %v322 = vpack.c.bf16 %v316, %v316
    %v323 = vpack.c.bf16 %v318, %v318
    %v326 = vunpack.c.l.b16 %v322
    %v327 = vunpack.c.l.b16 %v323
    %v328 = vpack.c.b16 %v327, %v326
    %330 = vst [vmem:[#allocation11] sm:$0xff] %v328
    %v331 = vld [vmem:[#allocation8] sm:$0xf]
    %v332 = vld [vmem:[#allocation8 + $0x4] sm:$0xf]
    %v333 = vld [vmem:[#allocation8 + $0x8] sm:$0xf]
    %v334 = vld [vmem:[#allocation8 + $0xc] sm:$0xf]
    %v335 = vld [vmem:[#allocation8 + $0x10] sm:$0xf]
    %v336 = vld [vmem:[#allocation8 + $0x14] sm:$0xf]
    %v337 = vld [vmem:[#allocation8 + $0x18] sm:$0xf]
    %v338 = vld [vmem:[#allocation8 + $0x1c] sm:$0xf]
    %v339 = vld [vmem:[#allocation8 + $0x20] sm:$0xf]
    %v340 = vld [vmem:[#allocation8 + $0x24] sm:$0xf]
    %v341 = vld [vmem:[#allocation8 + $0x28] sm:$0xf]
    %v342 = vld [vmem:[#allocation8 + $0x2c] sm:$0xf]
    %v343 = vld [vmem:[#allocation8 + $0x30] sm:$0xf]
    %v344 = vld [vmem:[#allocation8 + $0x34] sm:$0xf]
    %v345 = vld [vmem:[#allocation8 + $0x38] sm:$0xf]
    %v346 = vld [vmem:[#allocation8 + $0x3c] sm:$0xf]
    %v347 = vld [vmem:[%s6] sm:$0x1]
    %v349 = vlaneseq
    %v350 = vshrl.u32 %v349, 7
    %v351 = vsub.s32 0, %v350
    %v352 = vrot.slane %v347, %v351
    %v370 = vunpack.c.l.b16 %v331
    %v371 = vunpack.c.l.b16 %v332
    %v372 = vunpack.c.l.b16 %v333
    %v373 = vunpack.c.l.b16 %v334
    %v374 = vunpack.c.l.b16 %v335
    %v375 = vunpack.c.l.b16 %v336
    %v376 = vunpack.c.l.b16 %v337
    %v377 = vunpack.c.l.b16 %v338
    %v378 = vunpack.c.l.b16 %v339
    %v379 = vunpack.c.l.b16 %v340
    %v380 = vunpack.c.l.b16 %v341
    %v381 = vunpack.c.l.b16 %v342
    %v382 = vunpack.c.l.b16 %v343
    %v383 = vunpack.c.l.b16 %v344
    %v384 = vunpack.c.l.b16 %v345
    %v385 = vunpack.c.l.b16 %v346
    %v386 = vpack.c.b16 %v371, %v370
    %v387 = vpack.c.b16 %v373, %v372
    %v388 = vpack.c.b16 %v375, %v374
    %v389 = vpack.c.b16 %v377, %v376
    %v390 = vpack.c.b16 %v379, %v378
    %v391 = vpack.c.b16 %v381, %v380
    %v392 = vpack.c.b16 %v383, %v382
    %v393 = vpack.c.b16 %v385, %v384
    %402 = vmatprep.subr.bf16.mxu0 0
    %403 = vmatpush1.bf16.msra.mxu0 %v386
    %404 = vmatprep.subr.bf16.mxu0 0
    %405 = vmatpush1.bf16.msra.mxu0 %v387
    %406 = vmatprep.subr.bf16.mxu0 0
    %407 = vmatpush1.bf16.msra.mxu0 %v388
    %408 = vmatprep.subr.bf16.mxu0 0
    %409 = vmatpush1.bf16.msra.mxu0 %v389
    %410 = vmatprep.subr.bf16.mxu0 0
    %411 = vmatpush1.bf16.msra.mxu0 %v390
    %412 = vmatprep.subr.bf16.mxu0 0
    %413 = vmatpush1.bf16.msra.mxu0 %v391
    %414 = vmatprep.subr.bf16.mxu0 0
    %415 = vmatpush1.bf16.msra.mxu0 %v392
    %416 = vmatprep.subr.bf16.mxu0 0
    %417 = vmatpush1.bf16.msra.mxu0 %v393
    %418 = vmatprep.subr.bf16.mxu0 0
    %419 = vmatpush1.bf16.msra.mxu0 0
    %420 = vmatprep.subr.bf16.mxu0 0
    %421 = vmatpush1.bf16.msra.mxu0 0
    %422 = vmatprep.subr.bf16.mxu0 0
    %423 = vmatpush1.bf16.msra.mxu0 0
    %424 = vmatprep.subr.bf16.mxu0 0
    %425 = vmatpush1.bf16.msra.mxu0 0
    %426 = vmatprep.subr.bf16.mxu0 0
    %427 = vmatpush1.bf16.msra.mxu0 0
    %428 = vmatprep.subr.bf16.mxu0 0
    %429 = vmatpush1.bf16.msra.mxu0 0
    %430 = vmatprep.subr.bf16.mxu0 0
    %431 = vmatpush1.bf16.msra.mxu0 0
    %432 = vmatprep.subr.bf16.mxu0 0
    %433 = vmatpush1.bf16.msra.mxu0 0
    %434 = vmatprep.mubr.bf16.mxu0 0
    %435 = vmatmul.mubr.bf16.gmra.mrb[0].mxu0 %v322
    %v436 = vpop.f32.mrb[0].mxu0
    %v437 = vadd.f32 %v352, %v436
    %v438 = vpop.f32.mrb[0].mxu0
    %v439 = vpop.f32.mrb[0].mxu0
    %v440 = vpop.f32.mrb[0].mxu0
    %441 = vdwg.mxu0
    %v442 = vmax.f32 %v437, 0.0
    %v443 = vpack.c.bf16 %v442, %v442
    %v444 = vld [vmem:[#allocation10] sm:$0xff]
    %v445 = vld [vmem:[#allocation10 + $0x8] sm:$0xff]
    %v446 = vld [vmem:[#allocation10 + $0x10] sm:$0xff]
    %v447 = vld [vmem:[#allocation10 + $0x18] sm:$0xff]
    %v448 = vld [vmem:[#allocation10 + $0x20] sm:$0xff]
    %v449 = vld [vmem:[#allocation10 + $0x28] sm:$0xff]
    %v450 = vld [vmem:[#allocation10 + $0x30] sm:$0xff]
    %v451 = vld [vmem:[#allocation10 + $0x38] sm:$0xff]
    %v452 = vld [vmem:[#allocation10 + $0x40] sm:$0xff]
    %v453 = vld [vmem:[#allocation10 + $0x48] sm:$0xff]
    %v454 = vld [vmem:[#allocation10 + $0x50] sm:$0xff]
    %v455 = vld [vmem:[#allocation10 + $0x58] sm:$0xff]
    %v456 = vld [vmem:[#allocation10 + $0x60] sm:$0xff]
    %v457 = vld [vmem:[#allocation10 + $0x68] sm:$0xff]
    %v458 = vld [vmem:[#allocation10 + $0x70] sm:$0xff]
    %v459 = vld [vmem:[#allocation10 + $0x78] sm:$0xff]
    %v460 = vld [vmem:[%s8] sm:$0x3]
    %v462 = vlaneseq
    %v463 = vshrl.u32 %v462, 7
    %v464 = vsub.s32 0, %v463
    %v465 = vrot.slane %v460, %v464
    %v466 = vlaneseq
    %v467 = vshrl.u32 %v466, 7
    %v468 = vsub.s32 1, %v467
    %v469 = vrot.slane %v460, %v468
    %v488 = vunpack.c.l.b16 %v444
    %v489 = vunpack.c.h.b16 %v444
    %v490 = vunpack.c.l.b16 %v445
    %v491 = vunpack.c.h.b16 %v445
    %v492 = vunpack.c.l.b16 %v446
    %v493 = vunpack.c.h.b16 %v446
    %v494 = vunpack.c.l.b16 %v447
    %v495 = vunpack.c.h.b16 %v447
    %v496 = vunpack.c.l.b16 %v448
    %v497 = vunpack.c.h.b16 %v448
    %v498 = vunpack.c.l.b16 %v449
    %v499 = vunpack.c.h.b16 %v449
    %v500 = vunpack.c.l.b16 %v450
    %v501 = vunpack.c.h.b16 %v450
    %v502 = vunpack.c.l.b16 %v451
    %v503 = vunpack.c.h.b16 %v451
    %v504 = vunpack.c.l.b16 %v452
    %v505 = vunpack.c.h.b16 %v452
    %v506 = vunpack.c.l.b16 %v453
    %v507 = vunpack.c.h.b16 %v453
    %v508 = vunpack.c.l.b16 %v454
    %v509 = vunpack.c.h.b16 %v454
    %v510 = vunpack.c.l.b16 %v455
    %v511 = vunpack.c.h.b16 %v455
    %v512 = vunpack.c.l.b16 %v456
    %v513 = vunpack.c.h.b16 %v456
    %v514 = vunpack.c.l.b16 %v457
    %v515 = vunpack.c.h.b16 %v457
    %v516 = vunpack.c.l.b16 %v458
    %v517 = vunpack.c.h.b16 %v458
    %v518 = vunpack.c.l.b16 %v459
    %v519 = vunpack.c.h.b16 %v459
    %v520 = vpack.c.b16 %v490, %v488
    %v521 = vpack.c.b16 %v491, %v489
    %v522 = vpack.c.b16 %v494, %v492
    %v523 = vpack.c.b16 %v495, %v493
    %v524 = vpack.c.b16 %v498, %v496
    %v525 = vpack.c.b16 %v499, %v497
    %v526 = vpack.c.b16 %v502, %v500
    %v527 = vpack.c.b16 %v503, %v501
    %v528 = vpack.c.b16 %v506, %v504
    %v529 = vpack.c.b16 %v507, %v505
    %v530 = vpack.c.b16 %v510, %v508
    %v531 = vpack.c.b16 %v511, %v509
    %v532 = vpack.c.b16 %v514, %v512
    %v533 = vpack.c.b16 %v515, %v513
    %v534 = vpack.c.b16 %v518, %v516
    %v535 = vpack.c.b16 %v519, %v517
    %552 = vmatprep.subr.bf16.mxu0 %v521
    %553 = vmatpush1.bf16.msra.mxu0 %v520
    %554 = vmatprep.subr.bf16.mxu0 %v523
    %555 = vmatpush1.bf16.msra.mxu0 %v522
    %556 = vmatprep.subr.bf16.mxu0 %v525
    %557 = vmatpush1.bf16.msra.mxu0 %v524
    %558 = vmatprep.subr.bf16.mxu0 %v527
    %559 = vmatpush1.bf16.msra.mxu0 %v526
    %560 = vmatprep.subr.bf16.mxu0 %v529
    %561 = vmatpush1.bf16.msra.mxu0 %v528
    %562 = vmatprep.subr.bf16.mxu0 %v531
    %563 = vmatpush1.bf16.msra.mxu0 %v530
    %564 = vmatprep.subr.bf16.mxu0 %v533
    %565 = vmatpush1.bf16.msra.mxu0 %v532
    %566 = vmatprep.subr.bf16.mxu0 %v535
    %567 = vmatpush1.bf16.msra.mxu0 %v534
    %568 = vmatprep.subr.bf16.mxu0 0
    %569 = vmatpush1.bf16.msra.mxu0 0
    %570 = vmatprep.subr.bf16.mxu0 0
    %571 = vmatpush1.bf16.msra.mxu0 0
    %572 = vmatprep.subr.bf16.mxu0 0
    %573 = vmatpush1.bf16.msra.mxu0 0
    %574 = vmatprep.subr.bf16.mxu0 0
    %575 = vmatpush1.bf16.msra.mxu0 0
    %576 = vmatprep.subr.bf16.mxu0 0
    %577 = vmatpush1.bf16.msra.mxu0 0
    %578 = vmatprep.subr.bf16.mxu0 0
    %579 = vmatpush1.bf16.msra.mxu0 0
    %580 = vmatprep.subr.bf16.mxu0 0
    %581 = vmatpush1.bf16.msra.mxu0 0
    %582 = vmatprep.subr.bf16.mxu0 0
    %583 = vmatpush1.bf16.msra.mxu0 0
    %584 = vmatprep.mubr.bf16.mxu0 0
    %585 = vmatmul.mubr.bf16.gmra.mrb[0].mxu0 %v443
    %v586 = vpop.f32.mrb[0].mxu0
    %v587 = vadd.f32 %v465, %v586
    %v588 = vpop.f32.mrb[0].mxu0
    %v589 = vadd.f32 %v469, %v588
    %v590 = vpop.f32.mrb[0].mxu0
    %v591 = vpop.f32.mrb[0].mxu0
    %592 = vdwg.mxu0
    %v593 = vpack.c.bf16 %v587, %v587
    %594 = vst [vmem:[#allocation12] sm:$0xf] %v593
    %v595 = vmax.f32 %v589, 0.0
    %vm596 = vcmp.ne.f32.partialorder %v589, %v589
    %v597 = vadd.f32 %v589, 0.0
    %v598 = vand.u32 2147483647, %v589
    %v599 = vsub.f32 0.0, %v598
    %v600 = vmul.f32 %v599, 1.442695
    %v601 = vpow.pop %v600
    %v602 = vadd.f32 %v601, 1.0
    %v603 = vlog2.pop %v602
    %v604 = vmul.f32 %v603, 0.6931472
    %v605 = vmul.f32 -0.5, %v601
    %v606 = vadd.f32 %v605, 1.0
    %v607 = vmul.f32 %v606, %v601
    %v608 = vand.u32 2147483647, %v601
    %vm609 = vcmp.lt.f32.partialorder %v608, 0.0004427343
    %v610 = vsel %vm609, %v607, %v604
    %v611 = vadd.f32 %v595, %v610
    %v612 = vsel %vm596, %v597, %v611
    %v613 = vpack.c.bf16 %v612, %v612
    %614 = vst [vmem:[#allocation12 + $0x4] sm:$0xf] %v613
    // Predicated region
    $region58: #{tpu_custom_call.1} parent=1 // pred_check
      _
    $region59: #{tpu_custom_call.1} parent=1 // pred_check_branch
      %616 = sbr.rel (0) target = $region61
    $region60: #{tpu_custom_call.1} parent=1 // pred_region
      %s618 = ssub.s32 128, 128
      %619 = vsyncadd [#allocation4], %s618
      %s621 = sshll.u32 [#allocation11], 4
      %s622 = int_to_ptr.vmem [resolvable:$true] %s621
      %624 = dma.vmem_to_hbm [thread:$0]  %s622, 128, %s9, [#allocation4]
    $region61: #{tpu_custom_call.1} parent=1 // pred_fallthru
      _
    // Predicated region
    $region62: #{tpu_custom_call.1} parent=1 // pred_check
      _
    $region63: #{tpu_custom_call.1} parent=1 // pred_check_branch
      %626 = sbr.rel (0) target = $region65
    $region64: #{tpu_custom_call.1} parent=1 // pred_region
      %s628 = ssub.s32 128, 128
      %629 = vsyncadd [#allocation13], %s628
      %s631 = sshll.u32 [#allocation12], 4
      %s632 = int_to_ptr.vmem [resolvable:$true] %s631
      %634 = dma.vmem_to_hbm [thread:$0]  %s632, 128, %s10, [#allocation13]
    $region65: #{tpu_custom_call.1} parent=1 // pred_fallthru
      _
    // Predicated region
    $region66: #{tpu_custom_call.1} parent=1 // pred_check
      _
    $region67: #{tpu_custom_call.1} parent=1 // pred_check_branch
      %636 = sbr.rel (0) target = $region69
    $region68: #{tpu_custom_call.1} parent=1 // pred_region
      %637 = dma.done [#allocation4], 128
    $region69: #{tpu_custom_call.1} parent=1 // pred_fallthru
      _
    // Predicated region
    $region70: #{tpu_custom_call.1} parent=1 // pred_check
      _
    $region71: #{tpu_custom_call.1} parent=1 // pred_check_branch
      %639 = sbr.rel (0) target = $region73
    $region72: #{tpu_custom_call.1} parent=1 // pred_region
      %640 = dma.done [#allocation13], 128
    $region73: #{tpu_custom_call.1} parent=1 // pred_fallthru
      _
    %641 = vsyncpa [#allocation3], 1
    %642 = vsyncpa [#allocation6], 1
    %643 = vsyncpa [#allocation9], 1
    %644 = vsyncpa [#allocation4], 1
    %645 = vsyncpa [#allocation13], 1

// kernel: tpu_custom_call.1
$region0: #{tpu_custom_call.1}
  #allocation0 [shape = 'u32[]', space=smem, size = 0x4, offset = 0x4, fixed_abs, tag = 'smem constant byte address 0x4 - core index']
  #allocation1 [shape = 'u32[144,128]{1,0:T(1,128)}', space=vmem, size = 0x12000, scoped, tag = 'internal scratch']
  %s0 = inlined_call_operand.hbm [shape: bf16[8,32], index: 0, kind: input, shape index: {}]
  %s1 = inlined_call_operand.hbm [shape: bf16[32,128], index: 1, kind: input, shape index: {}]
  %s2 = inlined_call_operand.vmem [shape: f32[1,128], index: 2, kind: input, shape index: {}]
  %s3 = inlined_call_operand.hbm [shape: bf16[128,256], index: 3, kind: input, shape index: {}]
  %s4 = inlined_call_operand.vmem [shape: f32[1,256], index: 4, kind: input, shape index: {}]
  %s5 = inlined_call_operand.hbm [shape: bf16[128,128], index: 5, kind: input, shape index: {}]
  %s6 = inlined_call_operand.vmem [shape: f32[1,128], index: 6, kind: input, shape index: {}]
  %s7 = inlined_call_operand.hbm [shape: bf16[128,256], index: 7, kind: input, shape index: {}]
  %s8 = inlined_call_operand.vmem [shape: f32[1,256], index: 8, kind: input, shape index: {}]
  %s9 = inlined_call_operand.hbm [shape: bf16[8,256], index: 9, kind: output, shape index: {0}]
  %s10 = inlined_call_operand.hbm [shape: bf16[8,256], index: 10, kind: output, shape index: {1}]
  %11 = xla_tuple %s9, %s10
  %s12 = sld [smem:[#allocation0]]
  $region74: #{tpu_custom_call.1} parent=0
    _
  %s14 = ssub.s32 1, %s12
  %s15 = scalar_select 0, %s14, %s12
  $region1: #{tpu_custom_call.1} parent=0
    #allocation2 [shape = 'u8[2048]{0}', space=vmem, size = 0x800, scoped, tag = 'input window, operand 0, single buffered']
    #allocation3 [shape = 's32[1]{0}', space=sflag, size = 0x4, scoped, tag = 'scoped memory for tpu_custom_call.1']
    #allocation4 [shape = 's32[1]{0}', space=sflag, size = 0x4, scoped, tag = 'scoped memory for tpu_custom_call.1']
    #allocation5 [shape = 'u8[8192]{0}', space=vmem, size = 0x2000, scoped, tag = 'input window, operand 1, single buffered']
    #allocation6 [shape = 's32[1]{0}', space=sflag, size = 0x4, scoped, tag = 'scoped memory for tpu_custom_call.1']
    #allocation7 [shape = 'u8[65536]{0}', space=vmem, size = 0x10000, scoped, tag = 'input window, operand 3, single buffered']
    #allocation8 [shape = 'u8[32768]{0}', space=vmem, size = 0x8000, scoped, tag = 'input window, operand 5, single buffered']
    #allocation9 [shape = 's32[1]{0}', space=sflag, size = 0x4, scoped, tag = 'scoped memory for tpu_custom_call.1']
    #allocation10 [shape = 'u8[65536]{0}', space=vmem, size = 0x10000, scoped, tag = 'input window, operand 7, single buffered']
    #allocation11 [shape = 'u8[4096]{0}', space=vmem, size = 0x1000, scoped, tag = 'output window, operand 0, single buffered']
    #allocation12 [shape = 'u8[4096]{0}', space=vmem, size = 0x1000, scoped, tag = 'output window, operand 1, single buffered']
    #allocation13 [shape = 's32[1]{0}', space=sflag, size = 0x4, scoped, tag = 'scoped memory for tpu_custom_call.1']
    %16 = vsyncpa [#allocation3], 0
    %17 = vsyncpa [#allocation6], 0
    %18 = vsyncpa [#allocation9], 0
    %19 = vsyncpa [#allocation4], 0
    %20 = vsyncpa [#allocation13], 0
    // Predicated region
    $region2: #{tpu_custom_call.1} parent=1 // pred_check
      _
    $region3: #{tpu_custom_call.1} parent=1 // pred_check_branch
      %22 = sbr.rel (0) target = $region5
    $region4: #{tpu_custom_call.1} parent=1 // pred_region
      %s24 = ssub.s32 64, 64
      %25 = vsyncadd [#allocation3], %s24
      %s27 = sshll.u32 [#allocation2], 4
      %s28 = int_to_ptr.vmem [resolvable:$true] %s27
      %30 = dma.hbm_to_vmem [thread:$0]  %s0, 64, %s28, [#allocation3]
    $region5: #{tpu_custom_call.1} parent=1 // pred_fallthru
      _
    // Predicated region
    $region6: #{tpu_custom_call.1} parent=1 // pred_check
      _
    $region7: #{tpu_custom_call.1} parent=1 // pred_check_branch
      %32 = sbr.rel (0) target = $region9
    $region8: #{tpu_custom_call.1} parent=1 // pred_region
      %s34 = ssub.s32 256, 256
      %35 = vsyncadd [#allocation6], %s34
      %s36 = sshll.u32 [#allocation5], 4
      %s37 = int_to_ptr.vmem [resolvable:$true] %s36
      %42 = dma.hbm_to_vmem [thread:$0]  %s1, 256, %s37, [#allocation6], 64, 64, 4
    $region9: #{tpu_custom_call.1} parent=1 // pred_fallthru
      _
    // Predicated region
    $region10: #{tpu_custom_call.1} parent=1 // pred_check
      _
    $region11: #{tpu_custom_call.1} parent=1 // pred_check_branch
      %44 = sbr.rel (0) target = $region13
    $region12: #{tpu_custom_call.1} parent=1 // pred_region
      _
    $region13: #{tpu_custom_call.1} parent=1 // pred_fallthru
      _
    // Predicated region
    $region14: #{tpu_custom_call.1} parent=1 // pred_check
      _
    $region15: #{tpu_custom_call.1} parent=1 // pred_check_branch
      %46 = sbr.rel (0) target = $region17
    $region16: #{tpu_custom_call.1} parent=1 // pred_region
      %s48 = ssub.s32 2048, 2048
      %49 = vsyncadd [#allocation6], %s48
      %s50 = sshll.u32 [#allocation7], 4
      %s51 = int_to_ptr.vmem [resolvable:$true] %s50
      %56 = dma.hbm_to_vmem [thread:$0]  %s3, 2048, %s51, [#allocation6], 128, 128, 8
    $region17: #{tpu_custom_call.1} parent=1 // pred_fallthru
      _
    // Predicated region
    $region18: #{tpu_custom_call.1} parent=1 // pred_check
      _
    $region19: #{tpu_custom_call.1} parent=1 // pred_check_branch
      %58 = sbr.rel (0) target = $region21
    $region20: #{tpu_custom_call.1} parent=1 // pred_region
      _
    $region21: #{tpu_custom_call.1} parent=1 // pred_fallthru
      _
    // Predicated region
    $region22: #{tpu_custom_call.1} parent=1 // pred_check
      _
    $region23: #{tpu_custom_call.1} parent=1 // pred_check_branch
      %60 = sbr.rel (0) target = $region25
    $region24: #{tpu_custom_call.1} parent=1 // pred_region
      %s62 = ssub.s32 1024, 1024
      %63 = vsyncadd [#allocation9], %s62
      %s64 = sshll.u32 [#allocation8], 4
      %s65 = int_to_ptr.vmem [resolvable:$true] %s64
      %70 = dma.hbm_to_vmem [thread:$0]  %s5, 1024, %s65, [#allocation9], 64, 64, 4
    $region25: #{tpu_custom_call.1} parent=1 // pred_fallthru
      _
    // Predicated region
    $region26: #{tpu_custom_call.1} parent=1 // pred_check
      _
    $region27: #{tpu_custom_call.1} parent=1 // pred_check_branch
      %72 = sbr.rel (0) target = $region29
    $region28: #{tpu_custom_call.1} parent=1 // pred_region
      _
    $region29: #{tpu_custom_call.1} parent=1 // pred_fallthru
      _
    // Predicated region
    $region30: #{tpu_custom_call.1} parent=1 // pred_check
      _
    $region31: #{tpu_custom_call.1} parent=1 // pred_check_branch
      %74 = sbr.rel (0) target = $region33
    $region32: #{tpu_custom_call.1} parent=1 // pred_region
      %s76 = ssub.s32 2048, 2048
      %77 = vsyncadd [#allocation9], %s76
      %s78 = sshll.u32 [#allocation10], 4
      %s79 = int_to_ptr.vmem [resolvable:$true] %s78
      %84 = dma.hbm_to_vmem [thread:$0]  %s7, 2048, %s79, [#allocation9], 128, 128, 8
    $region33: #{tpu_custom_call.1} parent=1 // pred_fallthru
      _
    // Predicated region
    $region34: #{tpu_custom_call.1} parent=1 // pred_check
      _
    $region35: #{tpu_custom_call.1} parent=1 // pred_check_branch
      %86 = sbr.rel (0) target = $region37
    $region36: #{tpu_custom_call.1} parent=1 // pred_region
      _
    $region37: #{tpu_custom_call.1} parent=1 // pred_fallthru
      _
    // Predicated region
    $region38: #{tpu_custom_call.1} parent=1 // pred_check
      _
    $region39: #{tpu_custom_call.1} parent=1 // pred_check_branch
      %88 = sbr.rel (0) target = $region41
    $region40: #{tpu_custom_call.1} parent=1 // pred_region
      %89 = dma.done [#allocation3], 64
    $region41: #{tpu_custom_call.1} parent=1 // pred_fallthru
      _
    // Predicated region
    $region42: #{tpu_custom_call.1} parent=1 // pred_check
      _
    $region43: #{tpu_custom_call.1} parent=1 // pred_check_branch
      %91 = sbr.rel (0) target = $region45
    $region44: #{tpu_custom_call.1} parent=1 // pred_region
      %92 = dma.done [#allocation6], 256
    $region45: #{tpu_custom_call.1} parent=1 // pred_fallthru
      _
    // Predicated region
    $region46: #{tpu_custom_call.1} parent=1 // pred_check
      _
    $region47: #{tpu_custom_call.1} parent=1 // pred_check_branch
      %94 = sbr.rel (0) target = $region49
    $region48: #{tpu_custom_call.1} parent=1 // pred_region
      %95 = dma.done [#allocation6], 2048
    $region49: #{tpu_custom_call.1} parent=1 // pred_fallthru
      _
    // Predicated region
    $region50: #{tpu_custom_call.1} parent=1 // pred_check
      _
    $region51: #{tpu_custom_call.1} parent=1 // pred_check_branch
      %97 = sbr.rel (0) target = $region53
    $region52: #{tpu_custom_call.1} parent=1 // pred_region
      %98 = dma.done [#allocation9], 1024
    $region53: #{tpu_custom_call.1} parent=1 // pred_fallthru
      _
    // Predicated region
    $region54: #{tpu_custom_call.1} parent=1 // pred_check
      _
    $region55: #{tpu_custom_call.1} parent=1 // pred_check_branch
      %100 = sbr.rel (0) target = $region57
    $region56: #{tpu_custom_call.1} parent=1 // pred_region
      %101 = dma.done [#allocation9], 2048
    $region57: #{tpu_custom_call.1} parent=1 // pred_fallthru
      _
    %v103 = vld [vmem:[#allocation2] sm:$0xf]
    %v104 = vld [vmem:[#allocation5] sm:$0xf]
    %v105 = vld [vmem:[#allocation5 + $0x4] sm:$0xf]
    %v106 = vld [vmem:[#allocation5 + $0x8] sm:$0xf]
    %v107 = vld [vmem:[#allocation5 + $0xc] sm:$0xf]
    %v108 = vld [vmem:[%s2] sm:$0x1]
    %v110 = vlaneseq
    %v111 = vshrl.u32 %v110, 7
    %v112 = vsub.s32 0, %v111
    %v113 = vrot.slane %v108, %v112
    %v119 = vunpack.c.l.b16 %v104
    %v120 = vunpack.c.l.b16 %v105
    %v121 = vunpack.c.l.b16 %v106
    %v122 = vunpack.c.l.b16 %v107
    %v123 = vpack.c.b16 %v120, %v119
    %v124 = vpack.c.b16 %v122, %v121
    %vm127 = vcmask 261120
    %v129 = vsel %vm127, %v103, 0
    %131 = vmatprep.subr.bf16.mxu0 0
    %132 = vmatpush1.bf16.msra.mxu0 %v123
    %133 = vmatprep.subr.bf16.mxu0 0
    %134 = vmatpush1.bf16.msra.mxu0 %v124
    %135 = vmatprep.subr.bf16.mxu0 0
    %136 = vmatpush1.bf16.msra.mxu0 0
    %137 = vmatprep.subr.bf16.mxu0 0
    %138 = vmatpush1.bf16.msra.mxu0 0
    %139 = vmatprep.subr.bf16.mxu0 0
    %140 = vmatpush1.bf16.msra.mxu0 0
    %141 = vmatprep.subr.bf16.mxu0 0
    %142 = vmatpush1.bf16.msra.mxu0 0
    %143 = vmatprep.subr.bf16.mxu0 0
    %144 = vmatpush1.bf16.msra.mxu0 0
    %145 = vmatprep.subr.bf16.mxu0 0
    %146 = vmatpush1.bf16.msra.mxu0 0
    %147 = vmatprep.subr.bf16.mxu0 0
    %148 = vmatpush1.bf16.msra.mxu0 0
    %149 = vmatprep.subr.bf16.mxu0 0
    %150 = vmatpush1.bf16.msra.mxu0 0
    %151 = vmatprep.subr.bf16.mxu0 0
    %152 = vmatpush1.bf16.msra.mxu0 0
    %153 = vmatprep.subr.bf16.mxu0 0
    %154 = vmatpush1.bf16.msra.mxu0 0
    %155 = vmatprep.subr.bf16.mxu0 0
    %156 = vmatpush1.bf16.msra.mxu0 0
    %157 = vmatprep.subr.bf16.mxu0 0
    %158 = vmatpush1.bf16.msra.mxu0 0
    %159 = vmatprep.subr.bf16.mxu0 0
    %160 = vmatpush1.bf16.msra.mxu0 0
    %161 = vmatprep.subr.bf16.mxu0 0
    %162 = vmatpush1.bf16.msra.mxu0 0
    %163 = vmatprep.mubr.bf16.mxu0 0
    %164 = vmatmul.mubr.bf16.gmra.mrb[0].mxu0 %v129
    %v165 = vpop.f32.mrb[0].mxu0
    %v166 = vadd.f32 %v113, %v165
    %v167 = vpop.f32.mrb[0].mxu0
    %v168 = vpop.f32.mrb[0].mxu0
    %v169 = vpop.f32.mrb[0].mxu0
    %170 = vdwg.mxu0
    %v171 = vmax.f32 %v166, 0.0
    %v172 = vpack.c.bf16 %v171, %v171
    %v173 = vld [vmem:[#allocation7] sm:$0xff]
    %v174 = vld [vmem:[#allocation7 + $0x8] sm:$0xff]
    %v175 = vld [vmem:[#allocation7 + $0x10] sm:$0xff]
    %v176 = vld [vmem:[#allocation7 + $0x18] sm:$0xff]
    %v177 = vld [vmem:[#allocation7 + $0x20] sm:$0xff]
    %v178 = vld [vmem:[#allocation7 + $0x28] sm:$0xff]
    %v179 = vld [vmem:[#allocation7 + $0x30] sm:$0xff]
    %v180 = vld [vmem:[#allocation7 + $0x38] sm:$0xff]
    %v181 = vld [vmem:[#allocation7 + $0x40] sm:$0xff]
    %v182 = vld [vmem:[#allocation7 + $0x48] sm:$0xff]
    %v183 = vld [vmem:[#allocation7 + $0x50] sm:$0xff]
    %v184 = vld [vmem:[#allocation7 + $0x58] sm:$0xff]
    %v185 = vld [vmem:[#allocation7 + $0x60] sm:$0xff]
    %v186 = vld [vmem:[#allocation7 + $0x68] sm:$0xff]
    %v187 = vld [vmem:[#allocation7 + $0x70] sm:$0xff]
    %v188 = vld [vmem:[#allocation7 + $0x78] sm:$0xff]
    %v189 = vld [vmem:[%s4] sm:$0x3]
    %v191 = vlaneseq
    %v192 = vshrl.u32 %v191, 7
    %v193 = vsub.s32 0, %v192
    %v194 = vrot.slane %v189, %v193
    %v195 = vlaneseq
    %v196 = vshrl.u32 %v195, 7
    %v197 = vsub.s32 1, %v196
    %v198 = vrot.slane %v189, %v197
    %v217 = vunpack.c.l.b16 %v173
    %v218 = vunpack.c.h.b16 %v173
    %v219 = vunpack.c.l.b16 %v174
    %v220 = vunpack.c.h.b16 %v174
    %v221 = vunpack.c.l.b16 %v175
    %v222 = vunpack.c.h.b16 %v175
    %v223 = vunpack.c.l.b16 %v176
    %v224 = vunpack.c.h.b16 %v176
    %v225 = vunpack.c.l.b16 %v177
    %v226 = vunpack.c.h.b16 %v177
    %v227 = vunpack.c.l.b16 %v178
    %v228 = vunpack.c.h.b16 %v178
    %v229 = vunpack.c.l.b16 %v179
    %v230 = vunpack.c.h.b16 %v179
    %v231 = vunpack.c.l.b16 %v180
    %v232 = vunpack.c.h.b16 %v180
    %v233 = vunpack.c.l.b16 %v181
    %v234 = vunpack.c.h.b16 %v181
    %v235 = vunpack.c.l.b16 %v182
    %v236 = vunpack.c.h.b16 %v182
    %v237 = vunpack.c.l.b16 %v183
    %v238 = vunpack.c.h.b16 %v183
    %v239 = vunpack.c.l.b16 %v184
    %v240 = vunpack.c.h.b16 %v184
    %v241 = vunpack.c.l.b16 %v185
    %v242 = vunpack.c.h.b16 %v185
    %v243 = vunpack.c.l.b16 %v186
    %v244 = vunpack.c.h.b16 %v186
    %v245 = vunpack.c.l.b16 %v187
    %v246 = vunpack.c.h.b16 %v187
    %v247 = vunpack.c.l.b16 %v188
    %v248 = vunpack.c.h.b16 %v188
    %v249 = vpack.c.b16 %v219, %v217
    %v250 = vpack.c.b16 %v220, %v218
    %v251 = vpack.c.b16 %v223, %v221
    %v252 = vpack.c.b16 %v224, %v222
    %v253 = vpack.c.b16 %v227, %v225
    %v254 = vpack.c.b16 %v228, %v226
    %v255 = vpack.c.b16 %v231, %v229
    %v256 = vpack.c.b16 %v232, %v230
    %v257 = vpack.c.b16 %v235, %v233
    %v258 = vpack.c.b16 %v236, %v234
    %v259 = vpack.c.b16 %v239, %v237
    %v260 = vpack.c.b16 %v240, %v238
    %v261 = vpack.c.b16 %v243, %v241
    %v262 = vpack.c.b16 %v244, %v242
    %v263 = vpack.c.b16 %v247, %v245
    %v264 = vpack.c.b16 %v248, %v246
    %281 = vmatprep.subr.bf16.mxu0 %v250
    %282 = vmatpush1.bf16.msra.mxu0 %v249
    %283 = vmatprep.subr.bf16.mxu0 %v252
    %284 = vmatpush1.bf16.msra.mxu0 %v251
    %285 = vmatprep.subr.bf16.mxu0 %v254
    %286 = vmatpush1.bf16.msra.mxu0 %v253
    %287 = vmatprep.subr.bf16.mxu0 %v256
    %288 = vmatpush1.bf16.msra.mxu0 %v255
    %289 = vmatprep.subr.bf16.mxu0 %v258
    %290 = vmatpush1.bf16.msra.mxu0 %v257
    %291 = vmatprep.subr.bf16.mxu0 %v260
    %292 = vmatpush1.bf16.msra.mxu0 %v259
    %293 = vmatprep.subr.bf16.mxu0 %v262
    %294 = vmatpush1.bf16.msra.mxu0 %v261
    %295 = vmatprep.subr.bf16.mxu0 %v264
    %296 = vmatpush1.bf16.msra.mxu0 %v263
    %297 = vmatprep.subr.bf16.mxu0 0
    %298 = vmatpush1.bf16.msra.mxu0 0
    %299 = vmatprep.subr.bf16.mxu0 0
    %300 = vmatpush1.bf16.msra.mxu0 0
    %301 = vmatprep.subr.bf16.mxu0 0
    %302 = vmatpush1.bf16.msra.mxu0 0
    %303 = vmatprep.subr.bf16.mxu0 0
    %304 = vmatpush1.bf16.msra.mxu0 0
    %305 = vmatprep.subr.bf16.mxu0 0
    %306 = vmatpush1.bf16.msra.mxu0 0
    %307 = vmatprep.subr.bf16.mxu0 0
    %308 = vmatpush1.bf16.msra.mxu0 0
    %309 = vmatprep.subr.bf16.mxu0 0
    %310 = vmatpush1.bf16.msra.mxu0 0
    %311 = vmatprep.subr.bf16.mxu0 0
    %312 = vmatpush1.bf16.msra.mxu0 0
    %313 = vmatprep.mubr.bf16.mxu0 0
    %314 = vmatmul.mubr.bf16.gmra.mrb[0].mxu0 %v172
    %v315 = vpop.f32.mrb[0].mxu0
    %v316 = vadd.f32 %v194, %v315
    %v317 = vpop.f32.mrb[0].mxu0
    %v318 = vadd.f32 %v198, %v317
    %v319 = vpop.f32.mrb[0].mxu0
    %v320 = vpop.f32.mrb[0].mxu0
    %321 = vdwg.mxu0
    %v322 = vpack.c.bf16 %v316, %v316
    %v323 = vpack.c.bf16 %v318, %v318
    %v326 = vunpack.c.l.b16 %v322
    %v327 = vunpack.c.l.b16 %v323
    %v328 = vpack.c.b16 %v327, %v326
    %330 = vst [vmem:[#allocation11] sm:$0xff] %v328
    %v331 = vld [vmem:[#allocation8] sm:$0xf]
    %v332 = vld [vmem:[#allocation8 + $0x4] sm:$0xf]
    %v333 = vld [vmem:[#allocation8 + $0x8] sm:$0xf]
    %v334 = vld [vmem:[#allocation8 + $0xc] sm:$0xf]
    %v335 = vld [vmem:[#allocation8 + $0x10] sm:$0xf]
    %v336 = vld [vmem:[#allocation8 + $0x14] sm:$0xf]
    %v337 = vld [vmem:[#allocation8 + $0x18] sm:$0xf]
    %v338 = vld [vmem:[#allocation8 + $0x1c] sm:$0xf]
    %v339 = vld [vmem:[#allocation8 + $0x20] sm:$0xf]
    %v340 = vld [vmem:[#allocation8 + $0x24] sm:$0xf]
    %v341 = vld [vmem:[#allocation8 + $0x28] sm:$0xf]
    %v342 = vld [vmem:[#allocation8 + $0x2c] sm:$0xf]
    %v343 = vld [vmem:[#allocation8 + $0x30] sm:$0xf]
    %v344 = vld [vmem:[#allocation8 + $0x34] sm:$0xf]
    %v345 = vld [vmem:[#allocation8 + $0x38] sm:$0xf]
    %v346 = vld [vmem:[#allocation8 + $0x3c] sm:$0xf]
    %v347 = vld [vmem:[%s6] sm:$0x1]
    %v349 = vlaneseq
    %v350 = vshrl.u32 %v349, 7
    %v351 = vsub.s32 0, %v350
    %v352 = vrot.slane %v347, %v351
    %v370 = vunpack.c.l.b16 %v331
    %v371 = vunpack.c.l.b16 %v332
    %v372 = vunpack.c.l.b16 %v333
    %v373 = vunpack.c.l.b16 %v334
    %v374 = vunpack.c.l.b16 %v335
    %v375 = vunpack.c.l.b16 %v336
    %v376 = vunpack.c.l.b16 %v337
    %v377 = vunpack.c.l.b16 %v338
    %v378 = vunpack.c.l.b16 %v339
    %v379 = vunpack.c.l.b16 %v340
    %v380 = vunpack.c.l.b16 %v341
    %v381 = vunpack.c.l.b16 %v342
    %v382 = vunpack.c.l.b16 %v343
    %v383 = vunpack.c.l.b16 %v344
    %v384 = vunpack.c.l.b16 %v345
    %v385 = vunpack.c.l.b16 %v346
    %v386 = vpack.c.b16 %v371, %v370
    %v387 = vpack.c.b16 %v373, %v372
    %v388 = vpack.c.b16 %v375, %v374
    %v389 = vpack.c.b16 %v377, %v376
    %v390 = vpack.c.b16 %v379, %v378
    %v391 = vpack.c.b16 %v381, %v380
    %v392 = vpack.c.b16 %v383, %v382
    %v393 = vpack.c.b16 %v385, %v384
    %402 = vmatprep.subr.bf16.mxu0 0
    %403 = vmatpush1.bf16.msra.mxu0 %v386
    %404 = vmatprep.subr.bf16.mxu0 0
    %405 = vmatpush1.bf16.msra.mxu0 %v387
    %406 = vmatprep.subr.bf16.mxu0 0
    %407 = vmatpush1.bf16.msra.mxu0 %v388
    %408 = vmatprep.subr.bf16.mxu0 0
    %409 = vmatpush1.bf16.msra.mxu0 %v389
    %410 = vmatprep.subr.bf16.mxu0 0
    %411 = vmatpush1.bf16.msra.mxu0 %v390
    %412 = vmatprep.subr.bf16.mxu0 0
    %413 = vmatpush1.bf16.msra.mxu0 %v391
    %414 = vmatprep.subr.bf16.mxu0 0
    %415 = vmatpush1.bf16.msra.mxu0 %v392
    %416 = vmatprep.subr.bf16.mxu0 0
    %417 = vmatpush1.bf16.msra.mxu0 %v393
    %418 = vmatprep.subr.bf16.mxu0 0
    %419 = vmatpush1.bf16.msra.mxu0 0
    %420 = vmatprep.subr.bf16.mxu0 0
    %421 = vmatpush1.bf16.msra.mxu0 0
    %422 = vmatprep.subr.bf16.mxu0 0
    %423 = vmatpush1.bf16.msra.mxu0 0
    %424 = vmatprep.subr.bf16.mxu0 0
    %425 = vmatpush1.bf16.msra.mxu0 0
    %426 = vmatprep.subr.bf16.mxu0 0
    %427 = vmatpush1.bf16.msra.mxu0 0
    %428 = vmatprep.subr.bf16.mxu0 0
    %429 = vmatpush1.bf16.msra.mxu0 0
    %430 = vmatprep.subr.bf16.mxu0 0
    %431 = vmatpush1.bf16.msra.mxu0 0
    %432 = vmatprep.subr.bf16.mxu0 0
    %433 = vmatpush1.bf16.msra.mxu0 0
    %434 = vmatprep.mubr.bf16.mxu0 0
    %435 = vmatmul.mubr.bf16.gmra.mrb[0].mxu0 %v322
    %v436 = vpop.f32.mrb[0].mxu0
    %v437 = vadd.f32 %v352, %v436
    %v438 = vpop.f32.mrb[0].mxu0
    %v439 = vpop.f32.mrb[0].mxu0
    %v440 = vpop.f32.mrb[0].mxu0
    %441 = vdwg.mxu0
    %v442 = vmax.f32 %v437, 0.0
    %v443 = vpack.c.bf16 %v442, %v442
    %v444 = vld [vmem:[#allocation10] sm:$0xff]
    %v445 = vld [vmem:[#allocation10 + $0x8] sm:$0xff]
    %v446 = vld [vmem:[#allocation10 + $0x10] sm:$0xff]
    %v447 = vld [vmem:[#allocation10 + $0x18] sm:$0xff]
    %v448 = vld [vmem:[#allocation10 + $0x20] sm:$0xff]
    %v449 = vld [vmem:[#allocation10 + $0x28] sm:$0xff]
    %v450 = vld [vmem:[#allocation10 + $0x30] sm:$0xff]
    %v451 = vld [vmem:[#allocation10 + $0x38] sm:$0xff]
    %v452 = vld [vmem:[#allocation10 + $0x40] sm:$0xff]
    %v453 = vld [vmem:[#allocation10 + $0x48] sm:$0xff]
    %v454 = vld [vmem:[#allocation10 + $0x50] sm:$0xff]
    %v455 = vld [vmem:[#allocation10 + $0x58] sm:$0xff]
    %v456 = vld [vmem:[#allocation10 + $0x60] sm:$0xff]
    %v457 = vld [vmem:[#allocation10 + $0x68] sm:$0xff]
    %v458 = vld [vmem:[#allocation10 + $0x70] sm:$0xff]
    %v459 = vld [vmem:[#allocation10 + $0x78] sm:$0xff]
    %v460 = vld [vmem:[%s8] sm:$0x3]
    %v462 = vlaneseq
    %v463 = vshrl.u32 %v462, 7
    %v464 = vsub.s32 0, %v463
    %v465 = vrot.slane %v460, %v464
    %v466 = vlaneseq
    %v467 = vshrl.u32 %v466, 7
    %v468 = vsub.s32 1, %v467
    %v469 = vrot.slane %v460, %v468
    %v488 = vunpack.c.l.b16 %v444
    %v489 = vunpack.c.h.b16 %v444
    %v490 = vunpack.c.l.b16 %v445
    %v491 = vunpack.c.h.b16 %v445
    %v492 = vunpack.c.l.b16 %v446
    %v493 = vunpack.c.h.b16 %v446
    %v494 = vunpack.c.l.b16 %v447
    %v495 = vunpack.c.h.b16 %v447
    %v496 = vunpack.c.l.b16 %v448
    %v497 = vunpack.c.h.b16 %v448
    %v498 = vunpack.c.l.b16 %v449
    %v499 = vunpack.c.h.b16 %v449
    %v500 = vunpack.c.l.b16 %v450
    %v501 = vunpack.c.h.b16 %v450
    %v502 = vunpack.c.l.b16 %v451
    %v503 = vunpack.c.h.b16 %v451
    %v504 = vunpack.c.l.b16 %v452
    %v505 = vunpack.c.h.b16 %v452
    %v506 = vunpack.c.l.b16 %v453
    %v507 = vunpack.c.h.b16 %v453
    %v508 = vunpack.c.l.b16 %v454
    %v509 = vunpack.c.h.b16 %v454
    %v510 = vunpack.c.l.b16 %v455
    %v511 = vunpack.c.h.b16 %v455
    %v512 = vunpack.c.l.b16 %v456
    %v513 = vunpack.c.h.b16 %v456
    %v514 = vunpack.c.l.b16 %v457
    %v515 = vunpack.c.h.b16 %v457
    %v516 = vunpack.c.l.b16 %v458
    %v517 = vunpack.c.h.b16 %v458
    %v518 = vunpack.c.l.b16 %v459
    %v519 = vunpack.c.h.b16 %v459
    %v520 = vpack.c.b16 %v490, %v488
    %v521 = vpack.c.b16 %v491, %v489
    %v522 = vpack.c.b16 %v494, %v492
    %v523 = vpack.c.b16 %v495, %v493
    %v524 = vpack.c.b16 %v498, %v496
    %v525 = vpack.c.b16 %v499, %v497
    %v526 = vpack.c.b16 %v502, %v500
    %v527 = vpack.c.b16 %v503, %v501
    %v528 = vpack.c.b16 %v506, %v504
    %v529 = vpack.c.b16 %v507, %v505
    %v530 = vpack.c.b16 %v510, %v508
    %v531 = vpack.c.b16 %v511, %v509
    %v532 = vpack.c.b16 %v514, %v512
    %v533 = vpack.c.b16 %v515, %v513
    %v534 = vpack.c.b16 %v518, %v516
    %v535 = vpack.c.b16 %v519, %v517
    %552 = vmatprep.subr.bf16.mxu0 %v521
    %553 = vmatpush1.bf16.msra.mxu0 %v520
    %554 = vmatprep.subr.bf16.mxu0 %v523
    %555 = vmatpush1.bf16.msra.mxu0 %v522
    %556 = vmatprep.subr.bf16.mxu0 %v525
    %557 = vmatpush1.bf16.msra.mxu0 %v524
    %558 = vmatprep.subr.bf16.mxu0 %v527
    %559 = vmatpush1.bf16.msra.mxu0 %v526
    %560 = vmatprep.subr.bf16.mxu0 %v529
    %561 = vmatpush1.bf16.msra.mxu0 %v528
    %562 = vmatprep.subr.bf16.mxu0 %v531
    %563 = vmatpush1.bf16.msra.mxu0 %v530
    %564 = vmatprep.subr.bf16.mxu0 %v533
    %565 = vmatpush1.bf16.msra.mxu0 %v532
    %566 = vmatprep.subr.bf16.mxu0 %v535
    %567 = vmatpush1.bf16.msra.mxu0 %v534
    %568 = vmatprep.subr.bf16.mxu0 0
    %569 = vmatpush1.bf16.msra.mxu0 0
    %570 = vmatprep.subr.bf16.mxu0 0
    %571 = vmatpush1.bf16.msra.mxu0 0
    %572 = vmatprep.subr.bf16.mxu0 0
    %573 = vmatpush1.bf16.msra.mxu0 0
    %574 = vmatprep.subr.bf16.mxu0 0
    %575 = vmatpush1.bf16.msra.mxu0 0
    %576 = vmatprep.subr.bf16.mxu0 0
    %577 = vmatpush1.bf16.msra.mxu0 0
    %578 = vmatprep.subr.bf16.mxu0 0
    %579 = vmatpush1.bf16.msra.mxu0 0
    %580 = vmatprep.subr.bf16.mxu0 0
    %581 = vmatpush1.bf16.msra.mxu0 0
    %582 = vmatprep.subr.bf16.mxu0 0
    %583 = vmatpush1.bf16.msra.mxu0 0
    %584 = vmatprep.mubr.bf16.mxu0 0
    %585 = vmatmul.mubr.bf16.gmra.mrb[0].mxu0 %v443
    %v586 = vpop.f32.mrb[0].mxu0
    %v587 = vadd.f32 %v465, %v586
    %v588 = vpop.f32.mrb[0].mxu0
    %v589 = vadd.f32 %v469, %v588
    %v590 = vpop.f32.mrb[0].mxu0
    %v591 = vpop.f32.mrb[0].mxu0
    %592 = vdwg.mxu0
    %v593 = vpack.c.bf16 %v587, %v587
    %594 = vst [vmem:[#allocation12] sm:$0xf] %v593
    %v595 = vmax.f32 %v589, 0.0
    %vm596 = vcmp.ne.f32.partialorder %v589, %v589
    %v597 = vadd.f32 %v589, 0.0
    %v598 = vand.u32 2147483647, %v589
    %v599 = vsub.f32 0.0, %v598
    %v600 = vmul.f32 %v599, 1.442695
    %v601 = vpow.pop %v600
    %v602 = vadd.f32 %v601, 1.0
    %v603 = vlog2.pop %v602
    %v604 = vmul.f32 %v603, 0.6931472
    %v605 = vmul.f32 -0.5, %v601
    %v606 = vadd.f32 %v605, 1.0
    %v607 = vmul.f32 %v606, %v601
    %v608 = vand.u32 2147483647, %v601
    %vm609 = vcmp.lt.f32.partialorder %v608, 0.0004427343
    %v610 = vsel %vm609, %v607, %v604
    %v611 = vadd.f32 %v595, %v610
    %v612 = vsel %vm596, %v597, %v611
    %v613 = vpack.c.bf16 %v612, %v612
    %614 = vst [vmem:[#allocation12 + $0x4] sm:$0xf] %v613
    // Predicated region
    $region58: #{tpu_custom_call.1} parent=1 // pred_check
      _
    $region59: #{tpu_custom_call.1} parent=1 // pred_check_branch
      %616 = sbr.rel (0) target = $region61
    $region60: #{tpu_custom_call.1} parent=1 // pred_region
      %s618 = ssub.s32 128, 128
      %619 = vsyncadd [#allocation4], %s618
      %s621 = sshll.u32 [#allocation11], 4
      %s622 = int_to_ptr.vmem [resolvable:$true] %s621
      %624 = dma.vmem_to_hbm [thread:$0]  %s622, 128, %s9, [#allocation4]
    $region61: #{tpu_custom_call.1} parent=1 // pred_fallthru
      _
    // Predicated region
    $region62: #{tpu_custom_call.1} parent=1 // pred_check
      _
    $region63: #{tpu_custom_call.1} parent=1 // pred_check_branch
      %626 = sbr.rel (0) target = $region65
    $region64: #{tpu_custom_call.1} parent=1 // pred_region
      %s628 = ssub.s32 128, 128
      %629 = vsyncadd [#allocation13], %s628
      %s631 = sshll.u32 [#allocation12], 4
      %s632 = int_to_ptr.vmem [resolvable:$true] %s631
      %634 = dma.vmem_to_hbm [thread:$0]  %s632, 128, %s10, [#allocation13]
    $region65: #{tpu_custom_call.1} parent=1 // pred_fallthru
      _
    // Predicated region
    $region66: #{tpu_custom_call.1} parent=1 // pred_check
      _
    $region67: #{tpu_custom_call.1} parent=1 // pred_check_branch
      %636 = sbr.rel (0) target = $region69
    $region68: #{tpu_custom_call.1} parent=1 // pred_region
      %637 = dma.done [#allocation4], 128
    $region69: #{tpu_custom_call.1} parent=1 // pred_fallthru
      _
    // Predicated region
    $region70: #{tpu_custom_call.1} parent=1 // pred_check
      _
    $region71: #{tpu_custom_call.1} parent=1 // pred_check_branch
      %639 = sbr.rel (0) target = $region73
    $region72: #{tpu_custom_call.1} parent=1 // pred_region
      %640 = dma.done [#allocation13], 128
    $region73: #{tpu_custom_call.1} parent=1 // pred_fallthru
      _
    %641 = vsyncpa [#allocation3], 1
    %642 = vsyncpa [#allocation6], 1
    %643 = vsyncpa [#allocation9], 1
    %644 = vsyncpa [#allocation4], 1
    %645 = vsyncpa [#allocation13], 1

</llo_original>
